<compile_context>
chip_gen: v6e
topology: v6e:2x2x1
jax: 0.10.0
libtpu: 0.0.40
codegen_flags: <defaults>
</compile_context>

<pallas_src>
import jax
import jax.numpy as jnp
from jax import lax
from jax.experimental import pallas as pl
from jax.experimental.pallas import tpu as pltpu

# ---- model hyper-parameters (small, consistent with the module) ------------
B = 2        # batch (demo)
D_IN = 64    # flattened 8x8 "image"
H = 32       # hidden (encoder width / number of LIF neurons)
C = 10       # classes
T = 8        # SNN simulation time steps
BETA = 0.9   # membrane leak
THR = 1.0    # firing threshold

LANE = 128   # TPU lane width (pad last dims to this)
TB = 128     # batch-tile rows per grid step


def _round_up(n, m):
    return ((n + m - 1) // m) * m


def gfet_kernel(x_ref, we_ref, be_ref, wd_ref, bd_ref, out_ref):
    # ---- encoder: bf16 x @ bf16 W_enc -> f32 input current (MXU, f32 acc) --
    cur = jnp.dot(x_ref[...], we_ref[...],
                  preferred_element_type=jnp.float32) + be_ref[...]

    # ---- snn: LIF dynamics over T steps, constant current (f32, VPU) -------
    def step(_, carry):
        v, spk_sum = carry
        v = BETA * v + cur
        spk = (v > THR).astype(jnp.float32)
        v = v - spk * THR                      # soft reset
        return v, spk_sum + spk

    _, spikes = lax.fori_loop(
        0, T, step, (jnp.zeros_like(cur), jnp.zeros_like(cur)), unroll=True)

    # ---- decoder: spike counts (integers 0..T, exact in bf16) @ (W_dec / T),
    #      then log_softmax over the padded lane axis (padded classes have a
    #      -1e30 bias so they vanish from the sum). --------------------------
    logits = jnp.dot(spikes.astype(jnp.bfloat16), wd_ref[...],
                     preferred_element_type=jnp.float32) + bd_ref[...]
    m = jnp.max(logits, axis=-1, keepdims=True)
    shifted = logits - m
    lse = jnp.log(jnp.sum(jnp.exp(shifted), axis=-1, keepdims=True))
    out_ref[...] = shifted - lse               # log_p_y (lane-dense store)


def gfet_forward(x, w_enc, b_enc, w_dec, b_dec, *, tb=TB):
    b, d_in = x.shape
    h = w_enc.shape[1]
    c = w_dec.shape[1]

    d_pad = _round_up(d_in, LANE)
    h_pad = _round_up(h, LANE)
    c_pad = _round_up(c, LANE)
    b_pad = _round_up(b, tb)

    # Lane/sublane-dense padded operands; bf16 for the MXU inputs; 1/T rate
    # scaling folded into w_dec; -1e30 bias on padded class lanes.
    xp = jnp.zeros((b_pad, d_pad), jnp.bfloat16).at[:b, :d_in].set(
        x.astype(jnp.bfloat16))
    wep = jnp.zeros((d_pad, h_pad), jnp.bfloat16).at[:d_in, :h].set(
        w_enc.astype(jnp.bfloat16))
    bep = jnp.zeros((1, h_pad), jnp.float32).at[:, :h].set(
        b_enc.astype(jnp.float32))
    wdp = jnp.zeros((h_pad, c_pad), jnp.bfloat16).at[:h, :c].set(
        (w_dec * (1.0 / T)).astype(jnp.bfloat16))
    bdp = jnp.full((1, c_pad), -1e30, jnp.float32).at[:, :c].set(
        b_dec.astype(jnp.float32))

    n_tiles = b_pad // tb
    flops = 2 * b_pad * (d_pad * h_pad + h_pad * c_pad) + T * 4 * b_pad * h_pad
    bytes_accessed = (xp.size * 2 + wep.size * 2 + bep.size * 4
                      + wdp.size * 2 + bdp.size * 4 + b_pad * c_pad * 4)
    cost = pl.CostEstimate(flops=flops,
                           transcendentals=b_pad * c_pad,
                           bytes_accessed=bytes_accessed)

    out = pl.pallas_call(
        gfet_kernel,
        out_shape=jax.ShapeDtypeStruct((b_pad, c_pad), jnp.float32),
        grid=(n_tiles,),
        in_specs=[
            pl.BlockSpec((tb, d_pad), lambda i: (i, 0)),      # x tile
            pl.BlockSpec((d_pad, h_pad), lambda i: (0, 0)),   # w_enc (resident)
            pl.BlockSpec((1, h_pad), lambda i: (0, 0)),       # b_enc
            pl.BlockSpec((h_pad, c_pad), lambda i: (0, 0)),   # w_dec/T
            pl.BlockSpec((1, c_pad), lambda i: (0, 0)),       # b_dec (padded -1e30)
        ],
        out_specs=pl.BlockSpec((tb, c_pad), lambda i: (i, 0)),
        compiler_params=pltpu.CompilerParams(
            dimension_semantics=("parallel",)),
        cost_estimate=cost,
    )(xp, wep, bep, wdp, bdp)

    return out[:b, :c]


def gfet_reference(x, w_enc, b_enc, w_dec, b_dec):
    # Pure-JAX reference with the same bf16-inputs / f32-accumulate matmuls.
    cur = jnp.dot(x.astype(jnp.bfloat16), w_enc.astype(jnp.bfloat16),
                  preferred_element_type=jnp.float32) + b_enc
    v = jnp.zeros_like(cur)
    s = jnp.zeros_like(cur)
    for _ in range(T):
        v = BETA * v + cur
        spk = (v > THR).astype(jnp.float32)
        v = v - spk * THR
        s = s + spk
    wd = (w_dec * (1.0 / T)).astype(jnp.bfloat16)
    logits = jnp.dot(s.astype(jnp.bfloat16), wd,
                     preferred_element_type=jnp.float32) + b_dec
    return jax.nn.log_softmax(logits, axis=-1)


if __name__ == "__main__":
    key = jax.random.PRNGKey(0)
    kx, ke, kbe, kd, kbd, kb = jax.random.split(key, 6)

    x = jax.random.normal(kx, (B, D_IN), dtype=jnp.float32)
    w_enc = jax.random.normal(ke, (D_IN, H), dtype=jnp.float32) * (1.0 / D_IN ** 0.5)
    b_enc = jax.random.normal(kbe, (1, H), dtype=jnp.float32) * 0.1
    w_dec = jax.random.normal(kd, (H, C), dtype=jnp.float32) * (1.0 / H ** 0.5)
    b_dec = jax.random.normal(kbd, (1, C), dtype=jnp.float32) * 0.1

    fwd = jax.jit(gfet_forward)

    # Small-batch correctness check vs the pure-JAX reference.
    log_p_y = jax.block_until_ready(fwd(x, w_enc, b_enc, w_dec, b_dec))
    ref = gfet_reference(x, w_enc, b_enc, w_dec, b_dec)
    assert log_p_y.shape == (B, C)
    assert jnp.allclose(log_p_y, ref, atol=1e-4, rtol=1e-4), "mismatch vs reference"

    # Larger batch exercises the multi-tile grid (parallel across TCs on v7x).
    # Sanity checks only: the spike threshold is discontinuous, so bitwise
    # agreement with a separately compiled reference is not guaranteed at scale.
    x_big = jax.random.normal(kb, (256, D_IN), dtype=jnp.float32)
    out_big = jax.block_until_ready(fwd(x_big, w_enc, b_enc, w_dec, b_dec))
    assert out_big.shape == (256, C)
    assert bool(jnp.all(jnp.isfinite(out_big)))
    assert bool(jnp.allclose(jnp.sum(jnp.exp(out_big), axis=-1), 1.0, atol=1e-3))

    print("KERNEL_OK")
</pallas_src>

<mosaic_0001>
module attributes {stable_mosaic.version = 11 : i64} {
  func.func @gfet_kernel(%arg0: i32, %arg1: memref<128x128xbf16, #tpu.memory_space<vmem>>, %arg2: memref<128x128xbf16, #tpu.memory_space<vmem>>, %arg3: memref<1x128xf32, #tpu.memory_space<vmem>>, %arg4: memref<128x128xbf16, #tpu.memory_space<vmem>>, %arg5: memref<1x128xf32, #tpu.memory_space<vmem>>, %arg6: memref<128x128xf32, #tpu.memory_space<vmem>>) attributes {dimension_semantics = [#tpu.dimension_semantics<parallel>], iteration_bounds = array<i64: 1>, scalar_prefetch = 0 : i64, scratch_operands = 0 : i64, tpu.core_type = #tpu.core_type<tc>, window_params = [{transform_indices = @transform_0, window_bounds = array<i64: 128, 128>}, {pipeline_mode = #tpu.pipeline_mode<synchronous>, transform_indices = @transform_1, window_bounds = array<i64: 128, 128>}, {pipeline_mode = #tpu.pipeline_mode<synchronous>, transform_indices = @transform_2, window_bounds = array<i64: 1, 128>}, {pipeline_mode = #tpu.pipeline_mode<synchronous>, transform_indices = @transform_3, window_bounds = array<i64: 128, 128>}, {pipeline_mode = #tpu.pipeline_mode<synchronous>, transform_indices = @transform_4, window_bounds = array<i64: 1, 128>}, {transform_indices = @transform_5, window_bounds = array<i64: 128, 128>}]} {
    %c0 = arith.constant 0 : index
    %c0_0 = arith.constant 0 : index
    %0 = vector.load %arg1[%c0, %c0_0] : memref<128x128xbf16, #tpu.memory_space<vmem>>, vector<128x128xbf16>
    %c0_1 = arith.constant 0 : index
    %c0_2 = arith.constant 0 : index
    %1 = vector.load %arg2[%c0_1, %c0_2] : memref<128x128xbf16, #tpu.memory_space<vmem>>, vector<128x128xbf16>
    %cst = arith.constant dense<0.000000e+00> : vector<128x128xf32>
    %2 = tpu.matmul %0, %1, %cst {dimension_numbers = #tpu.dot_dimension_numbers<[1], [0], [0], [1], [0, 0, 1, 1], [], []>} : vector<128x128xbf16>, vector<128x128xbf16>, vector<128x128xf32> -> vector<128x128xf32>
    %c0_3 = arith.constant 0 : index
    %c0_4 = arith.constant 0 : index
    %3 = vector.load %arg3[%c0_3, %c0_4] : memref<1x128xf32, #tpu.memory_space<vmem>>, vector<1x128xf32>
    %4 = vector.broadcast %3 : vector<1x128xf32> to vector<128x128xf32>
    %5 = arith.addf %2, %4 : vector<128x128xf32>
    %cst_5 = arith.constant 0.000000e+00 : f32
    %6 = vector.broadcast %cst_5 : f32 to vector<128x128xf32>
    %cst_6 = arith.constant 0.000000e+00 : f32
    %7 = vector.broadcast %cst_6 : f32 to vector<128x128xf32>
    %c0_i32 = arith.constant 0 : i32
    %cst_7 = arith.constant 0.899999976 : f32
    %8 = vector.broadcast %cst_7 : f32 to vector<128x128xf32>
    %9 = arith.mulf %8, %6 : vector<128x128xf32>
    %10 = arith.addf %9, %5 : vector<128x128xf32>
    %cst_8 = arith.constant 1.000000e+00 : f32
    %11 = vector.broadcast %cst_8 : f32 to vector<128x128xf32>
    %12 = arith.cmpf ogt, %10, %11 : vector<128x128xf32>
    %13 = arith.extui %12 : vector<128x128xi1> to vector<128x128xi32>
    %14 = arith.sitofp %13 : vector<128x128xi32> to vector<128x128xf32>
    %cst_9 = arith.constant 1.000000e+00 : f32
    %15 = vector.broadcast %cst_9 : f32 to vector<128x128xf32>
    %16 = arith.mulf %14, %15 : vector<128x128xf32>
    %17 = arith.subf %10, %16 : vector<128x128xf32>
    %18 = arith.addf %7, %14 : vector<128x128xf32>
    %c1_i32 = arith.constant 1 : i32
    %cst_10 = arith.constant 0.899999976 : f32
    %19 = vector.broadcast %cst_10 : f32 to vector<128x128xf32>
    %20 = arith.mulf %19, %17 : vector<128x128xf32>
    %21 = arith.addf %20, %5 : vector<128x128xf32>
    %cst_11 = arith.constant 1.000000e+00 : f32
    %22 = vector.broadcast %cst_11 : f32 to vector<128x128xf32>
    %23 = arith.cmpf ogt, %21, %22 : vector<128x128xf32>
    %24 = arith.extui %23 : vector<128x128xi1> to vector<128x128xi32>
    %25 = arith.sitofp %24 : vector<128x128xi32> to vector<128x128xf32>
    %cst_12 = arith.constant 1.000000e+00 : f32
    %26 = vector.broadcast %cst_12 : f32 to vector<128x128xf32>
    %27 = arith.mulf %25, %26 : vector<128x128xf32>
    %28 = arith.subf %21, %27 : vector<128x128xf32>
    %29 = arith.addf %18, %25 : vector<128x128xf32>
    %c2_i32 = arith.constant 2 : i32
    %cst_13 = arith.constant 0.899999976 : f32
    %30 = vector.broadcast %cst_13 : f32 to vector<128x128xf32>
    %31 = arith.mulf %30, %28 : vector<128x128xf32>
    %32 = arith.addf %31, %5 : vector<128x128xf32>
    %cst_14 = arith.constant 1.000000e+00 : f32
    %33 = vector.broadcast %cst_14 : f32 to vector<128x128xf32>
    %34 = arith.cmpf ogt, %32, %33 : vector<128x128xf32>
    %35 = arith.extui %34 : vector<128x128xi1> to vector<128x128xi32>
    %36 = arith.sitofp %35 : vector<128x128xi32> to vector<128x128xf32>
    %cst_15 = arith.constant 1.000000e+00 : f32
    %37 = vector.broadcast %cst_15 : f32 to vector<128x128xf32>
    %38 = arith.mulf %36, %37 : vector<128x128xf32>
    %39 = arith.subf %32, %38 : vector<128x128xf32>
    %40 = arith.addf %29, %36 : vector<128x128xf32>
    %c3_i32 = arith.constant 3 : i32
    %cst_16 = arith.constant 0.899999976 : f32
    %41 = vector.broadcast %cst_16 : f32 to vector<128x128xf32>
    %42 = arith.mulf %41, %39 : vector<128x128xf32>
    %43 = arith.addf %42, %5 : vector<128x128xf32>
    %cst_17 = arith.constant 1.000000e+00 : f32
    %44 = vector.broadcast %cst_17 : f32 to vector<128x128xf32>
    %45 = arith.cmpf ogt, %43, %44 : vector<128x128xf32>
    %46 = arith.extui %45 : vector<128x128xi1> to vector<128x128xi32>
    %47 = arith.sitofp %46 : vector<128x128xi32> to vector<128x128xf32>
    %cst_18 = arith.constant 1.000000e+00 : f32
    %48 = vector.broadcast %cst_18 : f32 to vector<128x128xf32>
    %49 = arith.mulf %47, %48 : vector<128x128xf32>
    %50 = arith.subf %43, %49 : vector<128x128xf32>
    %51 = arith.addf %40, %47 : vector<128x128xf32>
    %c4_i32 = arith.constant 4 : i32
    %cst_19 = arith.constant 0.899999976 : f32
    %52 = vector.broadcast %cst_19 : f32 to vector<128x128xf32>
    %53 = arith.mulf %52, %50 : vector<128x128xf32>
    %54 = arith.addf %53, %5 : vector<128x128xf32>
    %cst_20 = arith.constant 1.000000e+00 : f32
    %55 = vector.broadcast %cst_20 : f32 to vector<128x128xf32>
    %56 = arith.cmpf ogt, %54, %55 : vector<128x128xf32>
    %57 = arith.extui %56 : vector<128x128xi1> to vector<128x128xi32>
    %58 = arith.sitofp %57 : vector<128x128xi32> to vector<128x128xf32>
    %cst_21 = arith.constant 1.000000e+00 : f32
    %59 = vector.broadcast %cst_21 : f32 to vector<128x128xf32>
    %60 = arith.mulf %58, %59 : vector<128x128xf32>
    %61 = arith.subf %54, %60 : vector<128x128xf32>
    %62 = arith.addf %51, %58 : vector<128x128xf32>
    %c5_i32 = arith.constant 5 : i32
    %cst_22 = arith.constant 0.899999976 : f32
    %63 = vector.broadcast %cst_22 : f32 to vector<128x128xf32>
    %64 = arith.mulf %63, %61 : vector<128x128xf32>
    %65 = arith.addf %64, %5 : vector<128x128xf32>
    %cst_23 = arith.constant 1.000000e+00 : f32
    %66 = vector.broadcast %cst_23 : f32 to vector<128x128xf32>
    %67 = arith.cmpf ogt, %65, %66 : vector<128x128xf32>
    %68 = arith.extui %67 : vector<128x128xi1> to vector<128x128xi32>
    %69 = arith.sitofp %68 : vector<128x128xi32> to vector<128x128xf32>
    %cst_24 = arith.constant 1.000000e+00 : f32
    %70 = vector.broadcast %cst_24 : f32 to vector<128x128xf32>
    %71 = arith.mulf %69, %70 : vector<128x128xf32>
    %72 = arith.subf %65, %71 : vector<128x128xf32>
    %73 = arith.addf %62, %69 : vector<128x128xf32>
    %c6_i32 = arith.constant 6 : i32
    %cst_25 = arith.constant 0.899999976 : f32
    %74 = vector.broadcast %cst_25 : f32 to vector<128x128xf32>
    %75 = arith.mulf %74, %72 : vector<128x128xf32>
    %76 = arith.addf %75, %5 : vector<128x128xf32>
    %cst_26 = arith.constant 1.000000e+00 : f32
    %77 = vector.broadcast %cst_26 : f32 to vector<128x128xf32>
    %78 = arith.cmpf ogt, %76, %77 : vector<128x128xf32>
    %79 = arith.extui %78 : vector<128x128xi1> to vector<128x128xi32>
    %80 = arith.sitofp %79 : vector<128x128xi32> to vector<128x128xf32>
    %cst_27 = arith.constant 1.000000e+00 : f32
    %81 = vector.broadcast %cst_27 : f32 to vector<128x128xf32>
    %82 = arith.mulf %80, %81 : vector<128x128xf32>
    %83 = arith.subf %76, %82 : vector<128x128xf32>
    %84 = arith.addf %73, %80 : vector<128x128xf32>
    %c7_i32 = arith.constant 7 : i32
    %cst_28 = arith.constant 0.899999976 : f32
    %85 = vector.broadcast %cst_28 : f32 to vector<128x128xf32>
    %86 = arith.mulf %85, %83 : vector<128x128xf32>
    %87 = arith.addf %86, %5 : vector<128x128xf32>
    %cst_29 = arith.constant 1.000000e+00 : f32
    %88 = vector.broadcast %cst_29 : f32 to vector<128x128xf32>
    %89 = arith.cmpf ogt, %87, %88 : vector<128x128xf32>
    %90 = arith.extui %89 : vector<128x128xi1> to vector<128x128xi32>
    %91 = arith.sitofp %90 : vector<128x128xi32> to vector<128x128xf32>
    %cst_30 = arith.constant 1.000000e+00 : f32
    %92 = vector.broadcast %cst_30 : f32 to vector<128x128xf32>
    %93 = arith.mulf %91, %92 : vector<128x128xf32>
    %94 = arith.subf %87, %93 : vector<128x128xf32>
    %95 = arith.addf %84, %91 : vector<128x128xf32>
    %96 = arith.truncf %95 : vector<128x128xf32> to vector<128x128xbf16>
    %c0_31 = arith.constant 0 : index
    %c0_32 = arith.constant 0 : index
    %97 = vector.load %arg4[%c0_31, %c0_32] : memref<128x128xbf16, #tpu.memory_space<vmem>>, vector<128x128xbf16>
    %cst_33 = arith.constant dense<0.000000e+00> : vector<128x128xf32>
    %98 = tpu.matmul %96, %97, %cst_33 {dimension_numbers = #tpu.dot_dimension_numbers<[1], [0], [0], [1], [0, 0, 1, 1], [], []>} : vector<128x128xbf16>, vector<128x128xbf16>, vector<128x128xf32> -> vector<128x128xf32>
    %c0_34 = arith.constant 0 : index
    %c0_35 = arith.constant 0 : index
    %99 = vector.load %arg5[%c0_34, %c0_35] : memref<1x128xf32, #tpu.memory_space<vmem>>, vector<1x128xf32>
    %100 = vector.broadcast %99 : vector<1x128xf32> to vector<128x128xf32>
    %101 = arith.addf %98, %100 : vector<128x128xf32>
    %cst_36 = arith.constant dense<0xFF800000> : vector<128xf32>
    %102 = vector.multi_reduction <maximumf>, %101, %cst_36 [1] : vector<128x128xf32> to vector<128xf32>
    %103 = vector.shape_cast %102 : vector<128xf32> to vector<128x1xf32>
    %104 = vector.broadcast %103 : vector<128x1xf32> to vector<128x128xf32>
    %105 = arith.subf %101, %104 : vector<128x128xf32>
    %106 = math.exp %105 : vector<128x128xf32>
    %cst_37 = arith.constant dense<0.000000e+00> : vector<128xf32>
    %107 = vector.multi_reduction <add>, %106, %cst_37 [1] : vector<128x128xf32> to vector<128xf32>
    %108 = vector.shape_cast %107 : vector<128xf32> to vector<128x1xf32>
    %109 = math.log %108 : vector<128x1xf32>
    %110 = vector.broadcast %109 : vector<128x1xf32> to vector<128x128xf32>
    %111 = arith.subf %105, %110 : vector<128x128xf32>
    %c0_38 = arith.constant 0 : index
    %c0_39 = arith.constant 0 : index
    %112 = vector.load %arg6[%c0_38, %c0_39] : memref<128x128xf32, #tpu.memory_space<vmem>>, vector<128x128xf32>
    tpu.vector_store %arg6[%c0_38, %c0_39], %111 {strides = array<i32>} : memref<128x128xf32, #tpu.memory_space<vmem>>, vector<128x128xf32>,
    return
  }
  func.func @transform_0(%arg0: i32) -> (i32, i32) {
    %c0_i32 = arith.constant 0 : i32
    %c0_i32_0 = arith.constant 0 : i32
    return %arg0, %c0_i32 : i32, i32
  }
  func.func @transform_1(%arg0: i32) -> (i32, i32) {
    %c0_i32 = arith.constant 0 : i32
    %c0_i32_0 = arith.constant 0 : i32
    %c0_i32_1 = arith.constant 0 : i32
    return %c0_i32, %c0_i32_0 : i32, i32
  }
  func.func @transform_2(%arg0: i32) -> (i32, i32) {
    %c0_i32 = arith.constant 0 : i32
    %c0_i32_0 = arith.constant 0 : i32
    %c0_i32_1 = arith.constant 0 : i32
    return %c0_i32, %c0_i32_0 : i32, i32
  }
  func.func @transform_3(%arg0: i32) -> (i32, i32) {
    %c0_i32 = arith.constant 0 : i32
    %c0_i32_0 = arith.constant 0 : i32
    %c0_i32_1 = arith.constant 0 : i32
    return %c0_i32, %c0_i32_0 : i32, i32
  }
  func.func @transform_4(%arg0: i32) -> (i32, i32) {
    %c0_i32 = arith.constant 0 : i32
    %c0_i32_0 = arith.constant 0 : i32
    %c0_i32_1 = arith.constant 0 : i32
    return %c0_i32, %c0_i32_0 : i32, i32
  }
  func.func @transform_5(%arg0: i32) -> (i32, i32) {
    %c0_i32 = arith.constant 0 : i32
    %c0_i32_0 = arith.constant 0 : i32
    return %arg0, %c0_i32 : i32, i32
  }
}

</mosaic_0001>

<llo_original>
// kernel: gfet_forward.1
$region0: #{gfet_forward.1}
  #allocation0 [shape = 'u32[]', space=smem, size = 0x4, offset = 0x4, fixed_abs, tag = 'smem constant byte address 0x4 - core index']
  #allocation1 [shape = 'u32[144,128]{1,0:T(1,128)}', space=vmem, size = 0x12000, scoped, tag = 'internal scratch']
  %s0 = inlined_call_operand.vmem [shape: bf16[128,128], index: 0, kind: input, shape index: {}]
  %s1 = inlined_call_operand.vmem [shape: bf16[128,128], index: 1, kind: input, shape index: {}]
  %s2 = inlined_call_operand.vmem [shape: f32[1,128], index: 2, kind: input, shape index: {}]
  %s3 = inlined_call_operand.vmem [shape: bf16[128,128], index: 3, kind: input, shape index: {}]
  %s4 = inlined_call_operand.vmem [shape: f32[1,128], index: 4, kind: input, shape index: {}]
  %s5 = inlined_call_operand.vmem [shape: f32[128,128], index: 5, kind: output, shape index: {}]
  %s6 = sld [smem:[#allocation0]]
  $region30: #{gfet_forward.1} parent=0
    _
  %s8 = ssub.s32 1, %s6
  %s9 = scalar_select 0, %s8, %s6
  // Predicated region
  $region2: #{gfet_forward.1} parent=0 // pred_check
    _
  $region3: #{gfet_forward.1} parent=0 // pred_check_branch
    %11 = sbr.rel (0) target = $region5
  $region4: #{gfet_forward.1} parent=0 // pred_region
    _
  $region5: #{gfet_forward.1} parent=0 // pred_fallthru
    _
  // Predicated region
  $region6: #{gfet_forward.1} parent=0 // pred_check
    _
  $region7: #{gfet_forward.1} parent=0 // pred_check_branch
    %13 = sbr.rel (0) target = $region9
  $region8: #{gfet_forward.1} parent=0 // pred_region
    _
  $region9: #{gfet_forward.1} parent=0 // pred_fallthru
    _
  // Predicated region
  $region10: #{gfet_forward.1} parent=0 // pred_check
    _
  $region11: #{gfet_forward.1} parent=0 // pred_check_branch
    %15 = sbr.rel (0) target = $region13
  $region12: #{gfet_forward.1} parent=0 // pred_region
    _
  $region13: #{gfet_forward.1} parent=0 // pred_fallthru
    _
  // Predicated region
  $region14: #{gfet_forward.1} parent=0 // pred_check
    _
  $region15: #{gfet_forward.1} parent=0 // pred_check_branch
    %17 = sbr.rel (0) target = $region17
  $region16: #{gfet_forward.1} parent=0 // pred_region
    _
  $region17: #{gfet_forward.1} parent=0 // pred_fallthru
    _
  // Predicated region
  $region18: #{gfet_forward.1} parent=0 // pred_check
    _
  $region19: #{gfet_forward.1} parent=0 // pred_check_branch
    %19 = sbr.rel (0) target = $region21
  $region20: #{gfet_forward.1} parent=0 // pred_region
    _
  $region21: #{gfet_forward.1} parent=0 // pred_fallthru
    _
  %v21 = vld [vmem:[%s0] sm:$0xf]
  %v22 = vld [vmem:[%s0 + $0x4] sm:$0xf]
  %v23 = vld [vmem:[%s0 + $0x8] sm:$0xf]
  %v24 = vld [vmem:[%s0 + $0xc] sm:$0xf]
  %v25 = vld [vmem:[%s0 + $0x10] sm:$0xf]
  %v26 = vld [vmem:[%s0 + $0x14] sm:$0xf]
  %v27 = vld [vmem:[%s0 + $0x18] sm:$0xf]
  %v28 = vld [vmem:[%s0 + $0x1c] sm:$0xf]
  %v29 = vld [vmem:[%s0 + $0x20] sm:$0xf]
  %v30 = vld [vmem:[%s0 + $0x24] sm:$0xf]
  %v31 = vld [vmem:[%s0 + $0x28] sm:$0xf]
  %v32 = vld [vmem:[%s0 + $0x2c] sm:$0xf]
  %v33 = vld [vmem:[%s0 + $0x30] sm:$0xf]
  %v34 = vld [vmem:[%s0 + $0x34] sm:$0xf]
  %v35 = vld [vmem:[%s0 + $0x38] sm:$0xf]
  %v36 = vld [vmem:[%s0 + $0x3c] sm:$0xf]
  %v37 = vld [vmem:[%s1] sm:$0xf]
  %v38 = vld [vmem:[%s1 + $0x4] sm:$0xf]
  %v39 = vld [vmem:[%s1 + $0x8] sm:$0xf]
  %v40 = vld [vmem:[%s1 + $0xc] sm:$0xf]
  %v41 = vld [vmem:[%s1 + $0x10] sm:$0xf]
  %v42 = vld [vmem:[%s1 + $0x14] sm:$0xf]
  %v43 = vld [vmem:[%s1 + $0x18] sm:$0xf]
  %v44 = vld [vmem:[%s1 + $0x1c] sm:$0xf]
  %v45 = vld [vmem:[%s1 + $0x20] sm:$0xf]
  %v46 = vld [vmem:[%s1 + $0x24] sm:$0xf]
  %v47 = vld [vmem:[%s1 + $0x28] sm:$0xf]
  %v48 = vld [vmem:[%s1 + $0x2c] sm:$0xf]
  %v49 = vld [vmem:[%s1 + $0x30] sm:$0xf]
  %v50 = vld [vmem:[%s1 + $0x34] sm:$0xf]
  %v51 = vld [vmem:[%s1 + $0x38] sm:$0xf]
  %v52 = vld [vmem:[%s1 + $0x3c] sm:$0xf]
  %v53 = vld [vmem:[%s2] sm:$0x1]
  %v55 = vlaneseq
  %v56 = vshrl.u32 %v55, 7
  %v57 = vsub.s32 0, %v56
  %v58 = vrot.slane %v53, %v57
  %v76 = vunpack.c.l.b16 %v21
  %v77 = vunpack.c.l.b16 %v22
  %v78 = vunpack.c.l.b16 %v23
  %v79 = vunpack.c.l.b16 %v24
  %v80 = vunpack.c.l.b16 %v25
  %v81 = vunpack.c.l.b16 %v26
  %v82 = vunpack.c.l.b16 %v27
  %v83 = vunpack.c.l.b16 %v28
  %v84 = vunpack.c.l.b16 %v29
  %v85 = vunpack.c.l.b16 %v30
  %v86 = vunpack.c.l.b16 %v31
  %v87 = vunpack.c.l.b16 %v32
  %v88 = vunpack.c.l.b16 %v33
  %v89 = vunpack.c.l.b16 %v34
  %v90 = vunpack.c.l.b16 %v35
  %v91 = vunpack.c.l.b16 %v36
  %v92 = vpack.c.b16 %v77, %v76
  %v93 = vpack.c.b16 %v79, %v78
  %v94 = vpack.c.b16 %v81, %v80
  %v95 = vpack.c.b16 %v83, %v82
  %v96 = vpack.c.b16 %v85, %v84
  %v97 = vpack.c.b16 %v87, %v86
  %v98 = vpack.c.b16 %v89, %v88
  %v99 = vpack.c.b16 %v91, %v90
  %v124 = vunpack.c.l.b16 %v37
  %v125 = vunpack.c.l.b16 %v38
  %v126 = vunpack.c.l.b16 %v39
  %v127 = vunpack.c.l.b16 %v40
  %v128 = vunpack.c.l.b16 %v41
  %v129 = vunpack.c.l.b16 %v42
  %v130 = vunpack.c.l.b16 %v43
  %v131 = vunpack.c.l.b16 %v44
  %v132 = vunpack.c.l.b16 %v45
  %v133 = vunpack.c.l.b16 %v46
  %v134 = vunpack.c.l.b16 %v47
  %v135 = vunpack.c.l.b16 %v48
  %v136 = vunpack.c.l.b16 %v49
  %v137 = vunpack.c.l.b16 %v50
  %v138 = vunpack.c.l.b16 %v51
  %v139 = vunpack.c.l.b16 %v52
  %v140 = vpack.c.b16 %v125, %v124
  %v141 = vpack.c.b16 %v127, %v126
  %v142 = vpack.c.b16 %v129, %v128
  %v143 = vpack.c.b16 %v131, %v130
  %v144 = vpack.c.b16 %v133, %v132
  %v145 = vpack.c.b16 %v135, %v134
  %v146 = vpack.c.b16 %v137, %v136
  %v147 = vpack.c.b16 %v139, %v138
  %156 = vmatprep.subr.bf16.mxu0 0
  %157 = vmatpush1.bf16.msra.mxu0 %v147
  %158 = vmatprep.subr.bf16.mxu0 0
  %159 = vmatpush1.bf16.msra.mxu0 %v146
  %160 = vmatprep.subr.bf16.mxu0 0
  %161 = vmatpush1.bf16.msra.mxu0 %v145
  %162 = vmatprep.subr.bf16.mxu0 0
  %163 = vmatpush1.bf16.msra.mxu0 %v144
  %164 = vmatprep.subr.bf16.mxu0 0
  %165 = vmatpush1.bf16.msra.mxu0 %v143
  %166 = vmatprep.subr.bf16.mxu0 0
  %167 = vmatpush1.bf16.msra.mxu0 %v142
  %168 = vmatprep.subr.bf16.mxu0 0
  %169 = vmatpush1.bf16.msra.mxu0 %v141
  %170 = vmatprep.subr.bf16.mxu0 0
  %171 = vmatpush1.bf16.msra.mxu0 %v140
  %172 = vmatprep.subr.bf16.mxu0 0
  %173 = vmatpush2.bf16.msra.mxu0 0
  %174 = vmatprep.subr.bf16.mxu0 0
  %175 = vmatpush2.bf16.msra.mxu0 0
  %176 = vmatprep.subr.bf16.mxu0 0
  %177 = vmatpush2.bf16.msra.mxu0 0
  %178 = vmatprep.subr.bf16.mxu0 0
  %179 = vmatpush2.bf16.msra.mxu0 0
  %180 = vmatprep.subr.bf16.mxu0 0
  %181 = vmatpush2.bf16.msra.mxu0 0
  %182 = vmatprep.subr.bf16.mxu0 0
  %183 = vmatpush2.bf16.msra.mxu0 0
  %184 = vmatprep.subr.bf16.mxu0 0
  %185 = vmatpush2.bf16.msra.mxu0 0
  %186 = vmatprep.subr.bf16.mxu0 0
  %187 = vmatpush2.bf16.msra.mxu0 0
  %188 = vmatprep.mubr.bf16.mxu0 0
  %189 = vmatmul.mubr.bf16.gmra.mxu0 %v92
  %v190 = vpop.f32.mrf.mxu0
  %v191 = vadd.f32 %v58, %v190
  %v192 = vpop.f32.mrf.mxu0
  %v193 = vpop.f32.mrf.mxu0
  %v194 = vadd.f32 %v58, %v193
  %v195 = vpop.f32.mrf.mxu0
  %196 = vmatprep.mubr.bf16.mxu0 0
  %197 = vmatmul.mubr.bf16.gmra.mxu0 %v93
  %v198 = vpop.f32.mrf.mxu0
  %v199 = vadd.f32 %v58, %v198
  %v200 = vpop.f32.mrf.mxu0
  %v201 = vpop.f32.mrf.mxu0
  %v202 = vadd.f32 %v58, %v201
  %v203 = vpop.f32.mrf.mxu0
  %204 = vmatprep.mubr.bf16.mxu0 0
  %205 = vmatmul.mubr.bf16.gmra.mxu0 %v94
  %v206 = vpop.f32.mrf.mxu0
  %v207 = vadd.f32 %v58, %v206
  %v208 = vpop.f32.mrf.mxu0
  %v209 = vpop.f32.mrf.mxu0
  %v210 = vadd.f32 %v58, %v209
  %v211 = vpop.f32.mrf.mxu0
  %212 = vmatprep.mubr.bf16.mxu0 0
  %213 = vmatmul.mubr.bf16.gmra.mxu0 %v95
  %v214 = vpop.f32.mrf.mxu0
  %v215 = vadd.f32 %v58, %v214
  %v216 = vpop.f32.mrf.mxu0
  %v217 = vpop.f32.mrf.mxu0
  %v218 = vadd.f32 %v58, %v217
  %v219 = vpop.f32.mrf.mxu0
  %220 = vmatprep.mubr.bf16.mxu0 0
  %221 = vmatmul.mubr.bf16.gmra.mxu0 %v96
  %v222 = vpop.f32.mrf.mxu0
  %v223 = vadd.f32 %v58, %v222
  %v224 = vpop.f32.mrf.mxu0
  %v225 = vpop.f32.mrf.mxu0
  %v226 = vadd.f32 %v58, %v225
  %v227 = vpop.f32.mrf.mxu0
  %228 = vmatprep.mubr.bf16.mxu0 0
  %229 = vmatmul.mubr.bf16.gmra.mxu0 %v97
  %v230 = vpop.f32.mrf.mxu0
  %v231 = vadd.f32 %v58, %v230
  %v232 = vpop.f32.mrf.mxu0
  %v233 = vpop.f32.mrf.mxu0
  %v234 = vadd.f32 %v58, %v233
  %v235 = vpop.f32.mrf.mxu0
  %236 = vmatprep.mubr.bf16.mxu0 0
  %237 = vmatmul.mubr.bf16.gmra.mxu0 %v98
  %v238 = vpop.f32.mrf.mxu0
  %v239 = vadd.f32 %v58, %v238
  %v240 = vpop.f32.mrf.mxu0
  %v241 = vpop.f32.mrf.mxu0
  %v242 = vadd.f32 %v58, %v241
  %v243 = vpop.f32.mrf.mxu0
  %244 = vmatprep.mubr.bf16.mxu0 0
  %245 = vmatmul.mubr.bf16.gmra.mxu0 %v99
  %v246 = vpop.f32.mrf.mxu0
  %v247 = vadd.f32 %v58, %v246
  %v248 = vpop.f32.mrf.mxu0
  %v249 = vpop.f32.mrf.mxu0
  %v250 = vadd.f32 %v58, %v249
  %v251 = vpop.f32.mrf.mxu0
  %252 = vdwg.mxu0
  %v253 = vadd.f32 %v191, 0.0
  %v254 = vadd.f32 %v194, 0.0
  %v255 = vadd.f32 %v199, 0.0
  %v256 = vadd.f32 %v202, 0.0
  %v257 = vadd.f32 %v207, 0.0
  %v258 = vadd.f32 %v210, 0.0
  %v259 = vadd.f32 %v215, 0.0
  %v260 = vadd.f32 %v218, 0.0
  %v261 = vadd.f32 %v223, 0.0
  %v262 = vadd.f32 %v226, 0.0
  %v263 = vadd.f32 %v231, 0.0
  %v264 = vadd.f32 %v234, 0.0
  %v265 = vadd.f32 %v239, 0.0
  %v266 = vadd.f32 %v242, 0.0
  %v267 = vadd.f32 %v247, 0.0
  %v268 = vadd.f32 %v250, 0.0
  %vm269 = vcmp.gt.f32.partialorder %v253, 1.0
  %vm270 = vcmp.gt.f32.partialorder %v254, 1.0
  %vm271 = vcmp.gt.f32.partialorder %v255, 1.0
  %vm272 = vcmp.gt.f32.partialorder %v256, 1.0
  %vm273 = vcmp.gt.f32.partialorder %v257, 1.0
  %vm274 = vcmp.gt.f32.partialorder %v258, 1.0
  %vm275 = vcmp.gt.f32.partialorder %v259, 1.0
  %vm276 = vcmp.gt.f32.partialorder %v260, 1.0
  %vm277 = vcmp.gt.f32.partialorder %v261, 1.0
  %vm278 = vcmp.gt.f32.partialorder %v262, 1.0
  %vm279 = vcmp.gt.f32.partialorder %v263, 1.0
  %vm280 = vcmp.gt.f32.partialorder %v264, 1.0
  %vm281 = vcmp.gt.f32.partialorder %v265, 1.0
  %vm282 = vcmp.gt.f32.partialorder %v266, 1.0
  %vm283 = vcmp.gt.f32.partialorder %v267, 1.0
  %vm284 = vcmp.gt.f32.partialorder %v268, 1.0
  %v285 = vsel %vm269, 1, 0
  %v286 = vsel %vm270, 1, 0
  %v287 = vsel %vm271, 1, 0
  %v288 = vsel %vm272, 1, 0
  %v289 = vsel %vm273, 1, 0
  %v290 = vsel %vm274, 1, 0
  %v291 = vsel %vm275, 1, 0
  %v292 = vsel %vm276, 1, 0
  %v293 = vsel %vm277, 1, 0
  %v294 = vsel %vm278, 1, 0
  %v295 = vsel %vm279, 1, 0
  %v296 = vsel %vm280, 1, 0
  %v297 = vsel %vm281, 1, 0
  %v298 = vsel %vm282, 1, 0
  %v299 = vsel %vm283, 1, 0
  %v300 = vsel %vm284, 1, 0
  %v301 = vcvt.s32.f32 %v285
  %v302 = vcvt.s32.f32 %v286
  %v303 = vcvt.s32.f32 %v287
  %v304 = vcvt.s32.f32 %v288
  %v305 = vcvt.s32.f32 %v289
  %v306 = vcvt.s32.f32 %v290
  %v307 = vcvt.s32.f32 %v291
  %v308 = vcvt.s32.f32 %v292
  %v309 = vcvt.s32.f32 %v293
  %v310 = vcvt.s32.f32 %v294
  %v311 = vcvt.s32.f32 %v295
  %v312 = vcvt.s32.f32 %v296
  %v313 = vcvt.s32.f32 %v297
  %v314 = vcvt.s32.f32 %v298
  %v315 = vcvt.s32.f32 %v299
  %v316 = vcvt.s32.f32 %v300
  %v317 = vsub.f32 %v253, %v301
  %v318 = vsub.f32 %v254, %v302
  %v319 = vsub.f32 %v255, %v303
  %v320 = vsub.f32 %v256, %v304
  %v321 = vsub.f32 %v257, %v305
  %v322 = vsub.f32 %v258, %v306
  %v323 = vsub.f32 %v259, %v307
  %v324 = vsub.f32 %v260, %v308
  %v325 = vsub.f32 %v261, %v309
  %v326 = vsub.f32 %v262, %v310
  %v327 = vsub.f32 %v263, %v311
  %v328 = vsub.f32 %v264, %v312
  %v329 = vsub.f32 %v265, %v313
  %v330 = vsub.f32 %v266, %v314
  %v331 = vsub.f32 %v267, %v315
  %v332 = vsub.f32 %v268, %v316
  %v333 = vadd.f32 %v301, 0.0
  %v334 = vadd.f32 %v302, 0.0
  %v335 = vadd.f32 %v303, 0.0
  %v336 = vadd.f32 %v304, 0.0
  %v337 = vadd.f32 %v305, 0.0
  %v338 = vadd.f32 %v306, 0.0
  %v339 = vadd.f32 %v307, 0.0
  %v340 = vadd.f32 %v308, 0.0
  %v341 = vadd.f32 %v309, 0.0
  %v342 = vadd.f32 %v310, 0.0
  %v343 = vadd.f32 %v311, 0.0
  %v344 = vadd.f32 %v312, 0.0
  %v345 = vadd.f32 %v313, 0.0
  %v346 = vadd.f32 %v314, 0.0
  %v347 = vadd.f32 %v315, 0.0
  %v348 = vadd.f32 %v316, 0.0
  %v349 = vmul.f32 %v317, 0.9
  %v350 = vmul.f32 %v318, 0.9
  %v351 = vmul.f32 %v319, 0.9
  %v352 = vmul.f32 %v320, 0.9
  %v353 = vmul.f32 %v321, 0.9
  %v354 = vmul.f32 %v322, 0.9
  %v355 = vmul.f32 %v323, 0.9
  %v356 = vmul.f32 %v324, 0.9
  %v357 = vmul.f32 %v325, 0.9
  %v358 = vmul.f32 %v326, 0.9
  %v359 = vmul.f32 %v327, 0.9
  %v360 = vmul.f32 %v328, 0.9
  %v361 = vmul.f32 %v329, 0.9
  %v362 = vmul.f32 %v330, 0.9
  %v363 = vmul.f32 %v331, 0.9
  %v364 = vmul.f32 %v332, 0.9
  %v365 = vadd.f32 %v349, %v191
  %v366 = vadd.f32 %v350, %v194
  %v367 = vadd.f32 %v351, %v199
  %v368 = vadd.f32 %v352, %v202
  %v369 = vadd.f32 %v353, %v207
  %v370 = vadd.f32 %v354, %v210
  %v371 = vadd.f32 %v355, %v215
  %v372 = vadd.f32 %v356, %v218
  %v373 = vadd.f32 %v357, %v223
  %v374 = vadd.f32 %v358, %v226
  %v375 = vadd.f32 %v359, %v231
  %v376 = vadd.f32 %v360, %v234
  %v377 = vadd.f32 %v361, %v239
  %v378 = vadd.f32 %v362, %v242
  %v379 = vadd.f32 %v363, %v247
  %v380 = vadd.f32 %v364, %v250
  %vm381 = vcmp.gt.f32.partialorder %v365, 1.0
  %vm382 = vcmp.gt.f32.partialorder %v366, 1.0
  %vm383 = vcmp.gt.f32.partialorder %v367, 1.0
  %vm384 = vcmp.gt.f32.partialorder %v368, 1.0
  %vm385 = vcmp.gt.f32.partialorder %v369, 1.0
  %vm386 = vcmp.gt.f32.partialorder %v370, 1.0
  %vm387 = vcmp.gt.f32.partialorder %v371, 1.0
  %vm388 = vcmp.gt.f32.partialorder %v372, 1.0
  %vm389 = vcmp.gt.f32.partialorder %v373, 1.0
  %vm390 = vcmp.gt.f32.partialorder %v374, 1.0
  %vm391 = vcmp.gt.f32.partialorder %v375, 1.0
  %vm392 = vcmp.gt.f32.partialorder %v376, 1.0
  %vm393 = vcmp.gt.f32.partialorder %v377, 1.0
  %vm394 = vcmp.gt.f32.partialorder %v378, 1.0
  %vm395 = vcmp.gt.f32.partialorder %v379, 1.0
  %vm396 = vcmp.gt.f32.partialorder %v380, 1.0
  %v397 = vsel %vm381, 1, 0
  %v398 = vsel %vm382, 1, 0
  %v399 = vsel %vm383, 1, 0
  %v400 = vsel %vm384, 1, 0
  %v401 = vsel %vm385, 1, 0
  %v402 = vsel %vm386, 1, 0
  %v403 = vsel %vm387, 1, 0
  %v404 = vsel %vm388, 1, 0
  %v405 = vsel %vm389, 1, 0
  %v406 = vsel %vm390, 1, 0
  %v407 = vsel %vm391, 1, 0
  %v408 = vsel %vm392, 1, 0
  %v409 = vsel %vm393, 1, 0
  %v410 = vsel %vm394, 1, 0
  %v411 = vsel %vm395, 1, 0
  %v412 = vsel %vm396, 1, 0
  %v413 = vcvt.s32.f32 %v397
  %v414 = vcvt.s32.f32 %v398
  %v415 = vcvt.s32.f32 %v399
  %v416 = vcvt.s32.f32 %v400
  %v417 = vcvt.s32.f32 %v401
  %v418 = vcvt.s32.f32 %v402
  %v419 = vcvt.s32.f32 %v403
  %v420 = vcvt.s32.f32 %v404
  %v421 = vcvt.s32.f32 %v405
  %v422 = vcvt.s32.f32 %v406
  %v423 = vcvt.s32.f32 %v407
  %v424 = vcvt.s32.f32 %v408
  %v425 = vcvt.s32.f32 %v409
  %v426 = vcvt.s32.f32 %v410
  %v427 = vcvt.s32.f32 %v411
  %v428 = vcvt.s32.f32 %v412
  %v429 = vsub.f32 %v365, %v413
  %v430 = vsub.f32 %v366, %v414
  %v431 = vsub.f32 %v367, %v415
  %v432 = vsub.f32 %v368, %v416
  %v433 = vsub.f32 %v369, %v417
  %v434 = vsub.f32 %v370, %v418
  %v435 = vsub.f32 %v371, %v419
  %v436 = vsub.f32 %v372, %v420
  %v437 = vsub.f32 %v373, %v421
  %v438 = vsub.f32 %v374, %v422
  %v439 = vsub.f32 %v375, %v423
  %v440 = vsub.f32 %v376, %v424
  %v441 = vsub.f32 %v377, %v425
  %v442 = vsub.f32 %v378, %v426
  %v443 = vsub.f32 %v379, %v427
  %v444 = vsub.f32 %v380, %v428
  %v445 = vadd.f32 %v333, %v413
  %v446 = vadd.f32 %v334, %v414
  %v447 = vadd.f32 %v335, %v415
  %v448 = vadd.f32 %v336, %v416
  %v449 = vadd.f32 %v337, %v417
  %v450 = vadd.f32 %v338, %v418
  %v451 = vadd.f32 %v339, %v419
  %v452 = vadd.f32 %v340, %v420
  %v453 = vadd.f32 %v341, %v421
  %v454 = vadd.f32 %v342, %v422
  %v455 = vadd.f32 %v343, %v423
  %v456 = vadd.f32 %v344, %v424
  %v457 = vadd.f32 %v345, %v425
  %v458 = vadd.f32 %v346, %v426
  %v459 = vadd.f32 %v347, %v427
  %v460 = vadd.f32 %v348, %v428
  %v461 = vmul.f32 %v429, 0.9
  %v462 = vmul.f32 %v430, 0.9
  %v463 = vmul.f32 %v431, 0.9
  %v464 = vmul.f32 %v432, 0.9
  %v465 = vmul.f32 %v433, 0.9
  %v466 = vmul.f32 %v434, 0.9
  %v467 = vmul.f32 %v435, 0.9
  %v468 = vmul.f32 %v436, 0.9
  %v469 = vmul.f32 %v437, 0.9
  %v470 = vmul.f32 %v438, 0.9
  %v471 = vmul.f32 %v439, 0.9
  %v472 = vmul.f32 %v440, 0.9
  %v473 = vmul.f32 %v441, 0.9
  %v474 = vmul.f32 %v442, 0.9
  %v475 = vmul.f32 %v443, 0.9
  %v476 = vmul.f32 %v444, 0.9
  %v477 = vadd.f32 %v461, %v191
  %v478 = vadd.f32 %v462, %v194
  %v479 = vadd.f32 %v463, %v199
  %v480 = vadd.f32 %v464, %v202
  %v481 = vadd.f32 %v465, %v207
  %v482 = vadd.f32 %v466, %v210
  %v483 = vadd.f32 %v467, %v215
  %v484 = vadd.f32 %v468, %v218
  %v485 = vadd.f32 %v469, %v223
  %v486 = vadd.f32 %v470, %v226
  %v487 = vadd.f32 %v471, %v231
  %v488 = vadd.f32 %v472, %v234
  %v489 = vadd.f32 %v473, %v239
  %v490 = vadd.f32 %v474, %v242
  %v491 = vadd.f32 %v475, %v247
  %v492 = vadd.f32 %v476, %v250
  %vm493 = vcmp.gt.f32.partialorder %v477, 1.0
  %vm494 = vcmp.gt.f32.partialorder %v478, 1.0
  %vm495 = vcmp.gt.f32.partialorder %v479, 1.0
  %vm496 = vcmp.gt.f32.partialorder %v480, 1.0
  %vm497 = vcmp.gt.f32.partialorder %v481, 1.0
  %vm498 = vcmp.gt.f32.partialorder %v482, 1.0
  %vm499 = vcmp.gt.f32.partialorder %v483, 1.0
  %vm500 = vcmp.gt.f32.partialorder %v484, 1.0
  %vm501 = vcmp.gt.f32.partialorder %v485, 1.0
  %vm502 = vcmp.gt.f32.partialorder %v486, 1.0
  %vm503 = vcmp.gt.f32.partialorder %v487, 1.0
  %vm504 = vcmp.gt.f32.partialorder %v488, 1.0
  %vm505 = vcmp.gt.f32.partialorder %v489, 1.0
  %vm506 = vcmp.gt.f32.partialorder %v490, 1.0
  %vm507 = vcmp.gt.f32.partialorder %v491, 1.0
  %vm508 = vcmp.gt.f32.partialorder %v492, 1.0
  %v509 = vsel %vm493, 1, 0
  %v510 = vsel %vm494, 1, 0
  %v511 = vsel %vm495, 1, 0
  %v512 = vsel %vm496, 1, 0
  %v513 = vsel %vm497, 1, 0
  %v514 = vsel %vm498, 1, 0
  %v515 = vsel %vm499, 1, 0
  %v516 = vsel %vm500, 1, 0
  %v517 = vsel %vm501, 1, 0
  %v518 = vsel %vm502, 1, 0
  %v519 = vsel %vm503, 1, 0
  %v520 = vsel %vm504, 1, 0
  %v521 = vsel %vm505, 1, 0
  %v522 = vsel %vm506, 1, 0
  %v523 = vsel %vm507, 1, 0
  %v524 = vsel %vm508, 1, 0
  %v525 = vcvt.s32.f32 %v509
  %v526 = vcvt.s32.f32 %v510
  %v527 = vcvt.s32.f32 %v511
  %v528 = vcvt.s32.f32 %v512
  %v529 = vcvt.s32.f32 %v513
  %v530 = vcvt.s32.f32 %v514
  %v531 = vcvt.s32.f32 %v515
  %v532 = vcvt.s32.f32 %v516
  %v533 = vcvt.s32.f32 %v517
  %v534 = vcvt.s32.f32 %v518
  %v535 = vcvt.s32.f32 %v519
  %v536 = vcvt.s32.f32 %v520
  %v537 = vcvt.s32.f32 %v521
  %v538 = vcvt.s32.f32 %v522
  %v539 = vcvt.s32.f32 %v523
  %v540 = vcvt.s32.f32 %v524
  %v541 = vsub.f32 %v477, %v525
  %v542 = vsub.f32 %v478, %v526
  %v543 = vsub.f32 %v479, %v527
  %v544 = vsub.f32 %v480, %v528
  %v545 = vsub.f32 %v481, %v529
  %v546 = vsub.f32 %v482, %v530
  %v547 = vsub.f32 %v483, %v531
  %v548 = vsub.f32 %v484, %v532
  %v549 = vsub.f32 %v485, %v533
  %v550 = vsub.f32 %v486, %v534
  %v551 = vsub.f32 %v487, %v535
  %v552 = vsub.f32 %v488, %v536
  %v553 = vsub.f32 %v489, %v537
  %v554 = vsub.f32 %v490, %v538
  %v555 = vsub.f32 %v491, %v539
  %v556 = vsub.f32 %v492, %v540
  %v557 = vadd.f32 %v445, %v525
  %v558 = vadd.f32 %v446, %v526
  %v559 = vadd.f32 %v447, %v527
  %v560 = vadd.f32 %v448, %v528
  %v561 = vadd.f32 %v449, %v529
  %v562 = vadd.f32 %v450, %v530
  %v563 = vadd.f32 %v451, %v531
  %v564 = vadd.f32 %v452, %v532
  %v565 = vadd.f32 %v453, %v533
  %v566 = vadd.f32 %v454, %v534
  %v567 = vadd.f32 %v455, %v535
  %v568 = vadd.f32 %v456, %v536
  %v569 = vadd.f32 %v457, %v537
  %v570 = vadd.f32 %v458, %v538
  %v571 = vadd.f32 %v459, %v539
  %v572 = vadd.f32 %v460, %v540
  %v573 = vmul.f32 %v541, 0.9
  %v574 = vmul.f32 %v542, 0.9
  %v575 = vmul.f32 %v543, 0.9
  %v576 = vmul.f32 %v544, 0.9
  %v577 = vmul.f32 %v545, 0.9
  %v578 = vmul.f32 %v546, 0.9
  %v579 = vmul.f32 %v547, 0.9
  %v580 = vmul.f32 %v548, 0.9
  %v581 = vmul.f32 %v549, 0.9
  %v582 = vmul.f32 %v550, 0.9
  %v583 = vmul.f32 %v551, 0.9
  %v584 = vmul.f32 %v552, 0.9
  %v585 = vmul.f32 %v553, 0.9
  %v586 = vmul.f32 %v554, 0.9
  %v587 = vmul.f32 %v555, 0.9
  %v588 = vmul.f32 %v556, 0.9
  %v589 = vadd.f32 %v573, %v191
  %v590 = vadd.f32 %v574, %v194
  %v591 = vadd.f32 %v575, %v199
  %v592 = vadd.f32 %v576, %v202
  %v593 = vadd.f32 %v577, %v207
  %v594 = vadd.f32 %v578, %v210
  %v595 = vadd.f32 %v579, %v215
  %v596 = vadd.f32 %v580, %v218
  %v597 = vadd.f32 %v581, %v223
  %v598 = vadd.f32 %v582, %v226
  %v599 = vadd.f32 %v583, %v231
  %v600 = vadd.f32 %v584, %v234
  %v601 = vadd.f32 %v585, %v239
  %v602 = vadd.f32 %v586, %v242
  %v603 = vadd.f32 %v587, %v247
  %v604 = vadd.f32 %v588, %v250
  %vm605 = vcmp.gt.f32.partialorder %v589, 1.0
  %vm606 = vcmp.gt.f32.partialorder %v590, 1.0
  %vm607 = vcmp.gt.f32.partialorder %v591, 1.0
  %vm608 = vcmp.gt.f32.partialorder %v592, 1.0
  %vm609 = vcmp.gt.f32.partialorder %v593, 1.0
  %vm610 = vcmp.gt.f32.partialorder %v594, 1.0
  %vm611 = vcmp.gt.f32.partialorder %v595, 1.0
  %vm612 = vcmp.gt.f32.partialorder %v596, 1.0
  %vm613 = vcmp.gt.f32.partialorder %v597, 1.0
  %vm614 = vcmp.gt.f32.partialorder %v598, 1.0
  %vm615 = vcmp.gt.f32.partialorder %v599, 1.0
  %vm616 = vcmp.gt.f32.partialorder %v600, 1.0
  %vm617 = vcmp.gt.f32.partialorder %v601, 1.0
  %vm618 = vcmp.gt.f32.partialorder %v602, 1.0
  %vm619 = vcmp.gt.f32.partialorder %v603, 1.0
  %vm620 = vcmp.gt.f32.partialorder %v604, 1.0
  %v621 = vsel %vm605, 1, 0
  %v622 = vsel %vm606, 1, 0
  %v623 = vsel %vm607, 1, 0
  %v624 = vsel %vm608, 1, 0
  %v625 = vsel %vm609, 1, 0
  %v626 = vsel %vm610, 1, 0
  %v627 = vsel %vm611, 1, 0
  %v628 = vsel %vm612, 1, 0
  %v629 = vsel %vm613, 1, 0
  %v630 = vsel %vm614, 1, 0
  %v631 = vsel %vm615, 1, 0
  %v632 = vsel %vm616, 1, 0
  %v633 = vsel %vm617, 1, 0
  %v634 = vsel %vm618, 1, 0
  %v635 = vsel %vm619, 1, 0
  %v636 = vsel %vm620, 1, 0
  %v637 = vcvt.s32.f32 %v621
  %v638 = vcvt.s32.f32 %v622
  %v639 = vcvt.s32.f32 %v623
  %v640 = vcvt.s32.f32 %v624
  %v641 = vcvt.s32.f32 %v625
  %v642 = vcvt.s32.f32 %v626
  %v643 = vcvt.s32.f32 %v627
  %v644 = vcvt.s32.f32 %v628
  %v645 = vcvt.s32.f32 %v629
  %v646 = vcvt.s32.f32 %v630
  %v647 = vcvt.s32.f32 %v631
  %v648 = vcvt.s32.f32 %v632
  %v649 = vcvt.s32.f32 %v633
  %v650 = vcvt.s32.f32 %v634
  %v651 = vcvt.s32.f32 %v635
  %v652 = vcvt.s32.f32 %v636
  %v653 = vsub.f32 %v589, %v637
  %v654 = vsub.f32 %v590, %v638
  %v655 = vsub.f32 %v591, %v639
  %v656 = vsub.f32 %v592, %v640
  %v657 = vsub.f32 %v593, %v641
  %v658 = vsub.f32 %v594, %v642
  %v659 = vsub.f32 %v595, %v643
  %v660 = vsub.f32 %v596, %v644
  %v661 = vsub.f32 %v597, %v645
  %v662 = vsub.f32 %v598, %v646
  %v663 = vsub.f32 %v599, %v647
  %v664 = vsub.f32 %v600, %v648
  %v665 = vsub.f32 %v601, %v649
  %v666 = vsub.f32 %v602, %v650
  %v667 = vsub.f32 %v603, %v651
  %v668 = vsub.f32 %v604, %v652
  %v669 = vadd.f32 %v557, %v637
  %v670 = vadd.f32 %v558, %v638
  %v671 = vadd.f32 %v559, %v639
  %v672 = vadd.f32 %v560, %v640
  %v673 = vadd.f32 %v561, %v641
  %v674 = vadd.f32 %v562, %v642
  %v675 = vadd.f32 %v563, %v643
  %v676 = vadd.f32 %v564, %v644
  %v677 = vadd.f32 %v565, %v645
  %v678 = vadd.f32 %v566, %v646
  %v679 = vadd.f32 %v567, %v647
  %v680 = vadd.f32 %v568, %v648
  %v681 = vadd.f32 %v569, %v649
  %v682 = vadd.f32 %v570, %v650
  %v683 = vadd.f32 %v571, %v651
  %v684 = vadd.f32 %v572, %v652
  %v685 = vmul.f32 %v653, 0.9
  %v686 = vmul.f32 %v654, 0.9
  %v687 = vmul.f32 %v655, 0.9
  %v688 = vmul.f32 %v656, 0.9
  %v689 = vmul.f32 %v657, 0.9
  %v690 = vmul.f32 %v658, 0.9
  %v691 = vmul.f32 %v659, 0.9
  %v692 = vmul.f32 %v660, 0.9
  %v693 = vmul.f32 %v661, 0.9
  %v694 = vmul.f32 %v662, 0.9
  %v695 = vmul.f32 %v663, 0.9
  %v696 = vmul.f32 %v664, 0.9
  %v697 = vmul.f32 %v665, 0.9
  %v698 = vmul.f32 %v666, 0.9
  %v699 = vmul.f32 %v667, 0.9
  %v700 = vmul.f32 %v668, 0.9
  %v701 = vadd.f32 %v685, %v191
  %v702 = vadd.f32 %v686, %v194
  %v703 = vadd.f32 %v687, %v199
  %v704 = vadd.f32 %v688, %v202
  %v705 = vadd.f32 %v689, %v207
  %v706 = vadd.f32 %v690, %v210
  %v707 = vadd.f32 %v691, %v215
  %v708 = vadd.f32 %v692, %v218
  %v709 = vadd.f32 %v693, %v223
  %v710 = vadd.f32 %v694, %v226
  %v711 = vadd.f32 %v695, %v231
  %v712 = vadd.f32 %v696, %v234
  %v713 = vadd.f32 %v697, %v239
  %v714 = vadd.f32 %v698, %v242
  %v715 = vadd.f32 %v699, %v247
  %v716 = vadd.f32 %v700, %v250
  %vm717 = vcmp.gt.f32.partialorder %v701, 1.0
  %vm718 = vcmp.gt.f32.partialorder %v702, 1.0
  %vm719 = vcmp.gt.f32.partialorder %v703, 1.0
  %vm720 = vcmp.gt.f32.partialorder %v704, 1.0
  %vm721 = vcmp.gt.f32.partialorder %v705, 1.0
  %vm722 = vcmp.gt.f32.partialorder %v706, 1.0
  %vm723 = vcmp.gt.f32.partialorder %v707, 1.0
  %vm724 = vcmp.gt.f32.partialorder %v708, 1.0
  %vm725 = vcmp.gt.f32.partialorder %v709, 1.0
  %vm726 = vcmp.gt.f32.partialorder %v710, 1.0
  %vm727 = vcmp.gt.f32.partialorder %v711, 1.0
  %vm728 = vcmp.gt.f32.partialorder %v712, 1.0
  %vm729 = vcmp.gt.f32.partialorder %v713, 1.0
  %vm730 = vcmp.gt.f32.partialorder %v714, 1.0
  %vm731 = vcmp.gt.f32.partialorder %v715, 1.0
  %vm732 = vcmp.gt.f32.partialorder %v716, 1.0
  %v733 = vsel %vm717, 1, 0
  %v734 = vsel %vm718, 1, 0
  %v735 = vsel %vm719, 1, 0
  %v736 = vsel %vm720, 1, 0
  %v737 = vsel %vm721, 1, 0
  %v738 = vsel %vm722, 1, 0
  %v739 = vsel %vm723, 1, 0
  %v740 = vsel %vm724, 1, 0
  %v741 = vsel %vm725, 1, 0
  %v742 = vsel %vm726, 1, 0
  %v743 = vsel %vm727, 1, 0
  %v744 = vsel %vm728, 1, 0
  %v745 = vsel %vm729, 1, 0
  %v746 = vsel %vm730, 1, 0
  %v747 = vsel %vm731, 1, 0
  %v748 = vsel %vm732, 1, 0
  %v749 = vcvt.s32.f32 %v733
  %v750 = vcvt.s32.f32 %v734
  %v751 = vcvt.s32.f32 %v735
  %v752 = vcvt.s32.f32 %v736
  %v753 = vcvt.s32.f32 %v737
  %v754 = vcvt.s32.f32 %v738
  %v755 = vcvt.s32.f32 %v739
  %v756 = vcvt.s32.f32 %v740
  %v757 = vcvt.s32.f32 %v741
  %v758 = vcvt.s32.f32 %v742
  %v759 = vcvt.s32.f32 %v743
  %v760 = vcvt.s32.f32 %v744
  %v761 = vcvt.s32.f32 %v745
  %v762 = vcvt.s32.f32 %v746
  %v763 = vcvt.s32.f32 %v747
  %v764 = vcvt.s32.f32 %v748
  %v765 = vsub.f32 %v701, %v749
  %v766 = vsub.f32 %v702, %v750
  %v767 = vsub.f32 %v703, %v751
  %v768 = vsub.f32 %v704, %v752
  %v769 = vsub.f32 %v705, %v753
  %v770 = vsub.f32 %v706, %v754
  %v771 = vsub.f32 %v707, %v755
  %v772 = vsub.f32 %v708, %v756
  %v773 = vsub.f32 %v709, %v757
  %v774 = vsub.f32 %v710, %v758
  %v775 = vsub.f32 %v711, %v759
  %v776 = vsub.f32 %v712, %v760
  %v777 = vsub.f32 %v713, %v761
  %v778 = vsub.f32 %v714, %v762
  %v779 = vsub.f32 %v715, %v763
  %v780 = vsub.f32 %v716, %v764
  %v781 = vadd.f32 %v669, %v749
  %v782 = vadd.f32 %v670, %v750
  %v783 = vadd.f32 %v671, %v751
  %v784 = vadd.f32 %v672, %v752
  %v785 = vadd.f32 %v673, %v753
  %v786 = vadd.f32 %v674, %v754
  %v787 = vadd.f32 %v675, %v755
  %v788 = vadd.f32 %v676, %v756
  %v789 = vadd.f32 %v677, %v757
  %v790 = vadd.f32 %v678, %v758
  %v791 = vadd.f32 %v679, %v759
  %v792 = vadd.f32 %v680, %v760
  %v793 = vadd.f32 %v681, %v761
  %v794 = vadd.f32 %v682, %v762
  %v795 = vadd.f32 %v683, %v763
  %v796 = vadd.f32 %v684, %v764
  %v797 = vmul.f32 %v765, 0.9
  %v798 = vmul.f32 %v766, 0.9
  %v799 = vmul.f32 %v767, 0.9
  %v800 = vmul.f32 %v768, 0.9
  %v801 = vmul.f32 %v769, 0.9
  %v802 = vmul.f32 %v770, 0.9
  %v803 = vmul.f32 %v771, 0.9
  %v804 = vmul.f32 %v772, 0.9
  %v805 = vmul.f32 %v773, 0.9
  %v806 = vmul.f32 %v774, 0.9
  %v807 = vmul.f32 %v775, 0.9
  %v808 = vmul.f32 %v776, 0.9
  %v809 = vmul.f32 %v777, 0.9
  %v810 = vmul.f32 %v778, 0.9
  %v811 = vmul.f32 %v779, 0.9
  %v812 = vmul.f32 %v780, 0.9
  %v813 = vadd.f32 %v797, %v191
  %v814 = vadd.f32 %v798, %v194
  %v815 = vadd.f32 %v799, %v199
  %v816 = vadd.f32 %v800, %v202
  %v817 = vadd.f32 %v801, %v207
  %v818 = vadd.f32 %v802, %v210
  %v819 = vadd.f32 %v803, %v215
  %v820 = vadd.f32 %v804, %v218
  %v821 = vadd.f32 %v805, %v223
  %v822 = vadd.f32 %v806, %v226
  %v823 = vadd.f32 %v807, %v231
  %v824 = vadd.f32 %v808, %v234
  %v825 = vadd.f32 %v809, %v239
  %v826 = vadd.f32 %v810, %v242
  %v827 = vadd.f32 %v811, %v247
  %v828 = vadd.f32 %v812, %v250
  %vm829 = vcmp.gt.f32.partialorder %v813, 1.0
  %vm830 = vcmp.gt.f32.partialorder %v814, 1.0
  %vm831 = vcmp.gt.f32.partialorder %v815, 1.0
  %vm832 = vcmp.gt.f32.partialorder %v816, 1.0
  %vm833 = vcmp.gt.f32.partialorder %v817, 1.0
  %vm834 = vcmp.gt.f32.partialorder %v818, 1.0
  %vm835 = vcmp.gt.f32.partialorder %v819, 1.0
  %vm836 = vcmp.gt.f32.partialorder %v820, 1.0
  %vm837 = vcmp.gt.f32.partialorder %v821, 1.0
  %vm838 = vcmp.gt.f32.partialorder %v822, 1.0
  %vm839 = vcmp.gt.f32.partialorder %v823, 1.0
  %vm840 = vcmp.gt.f32.partialorder %v824, 1.0
  %vm841 = vcmp.gt.f32.partialorder %v825, 1.0
  %vm842 = vcmp.gt.f32.partialorder %v826, 1.0
  %vm843 = vcmp.gt.f32.partialorder %v827, 1.0
  %vm844 = vcmp.gt.f32.partialorder %v828, 1.0
  %v845 = vsel %vm829, 1, 0
  %v846 = vsel %vm830, 1, 0
  %v847 = vsel %vm831, 1, 0
  %v848 = vsel %vm832, 1, 0
  %v849 = vsel %vm833, 1, 0
  %v850 = vsel %vm834, 1, 0
  %v851 = vsel %vm835, 1, 0
  %v852 = vsel %vm836, 1, 0
  %v853 = vsel %vm837, 1, 0
  %v854 = vsel %vm838, 1, 0
  %v855 = vsel %vm839, 1, 0
  %v856 = vsel %vm840, 1, 0
  %v857 = vsel %vm841, 1, 0
  %v858 = vsel %vm842, 1, 0
  %v859 = vsel %vm843, 1, 0
  %v860 = vsel %vm844, 1, 0
  %v861 = vcvt.s32.f32 %v845
  %v862 = vcvt.s32.f32 %v846
  %v863 = vcvt.s32.f32 %v847
  %v864 = vcvt.s32.f32 %v848
  %v865 = vcvt.s32.f32 %v849
  %v866 = vcvt.s32.f32 %v850
  %v867 = vcvt.s32.f32 %v851
  %v868 = vcvt.s32.f32 %v852
  %v869 = vcvt.s32.f32 %v853
  %v870 = vcvt.s32.f32 %v854
  %v871 = vcvt.s32.f32 %v855
  %v872 = vcvt.s32.f32 %v856
  %v873 = vcvt.s32.f32 %v857
  %v874 = vcvt.s32.f32 %v858
  %v875 = vcvt.s32.f32 %v859
  %v876 = vcvt.s32.f32 %v860
  %v877 = vsub.f32 %v813, %v861
  %v878 = vsub.f32 %v814, %v862
  %v879 = vsub.f32 %v815, %v863
  %v880 = vsub.f32 %v816, %v864
  %v881 = vsub.f32 %v817, %v865
  %v882 = vsub.f32 %v818, %v866
  %v883 = vsub.f32 %v819, %v867
  %v884 = vsub.f32 %v820, %v868
  %v885 = vsub.f32 %v821, %v869
  %v886 = vsub.f32 %v822, %v870
  %v887 = vsub.f32 %v823, %v871
  %v888 = vsub.f32 %v824, %v872
  %v889 = vsub.f32 %v825, %v873
  %v890 = vsub.f32 %v826, %v874
  %v891 = vsub.f32 %v827, %v875
  %v892 = vsub.f32 %v828, %v876
  %v893 = vadd.f32 %v781, %v861
  %v894 = vadd.f32 %v782, %v862
  %v895 = vadd.f32 %v783, %v863
  %v896 = vadd.f32 %v784, %v864
  %v897 = vadd.f32 %v785, %v865
  %v898 = vadd.f32 %v786, %v866
  %v899 = vadd.f32 %v787, %v867
  %v900 = vadd.f32 %v788, %v868
  %v901 = vadd.f32 %v789, %v869
  %v902 = vadd.f32 %v790, %v870
  %v903 = vadd.f32 %v791, %v871
  %v904 = vadd.f32 %v792, %v872
  %v905 = vadd.f32 %v793, %v873
  %v906 = vadd.f32 %v794, %v874
  %v907 = vadd.f32 %v795, %v875
  %v908 = vadd.f32 %v796, %v876
  %v909 = vmul.f32 %v877, 0.9
  %v910 = vmul.f32 %v878, 0.9
  %v911 = vmul.f32 %v879, 0.9
  %v912 = vmul.f32 %v880, 0.9
  %v913 = vmul.f32 %v881, 0.9
  %v914 = vmul.f32 %v882, 0.9
  %v915 = vmul.f32 %v883, 0.9
  %v916 = vmul.f32 %v884, 0.9
  %v917 = vmul.f32 %v885, 0.9
  %v918 = vmul.f32 %v886, 0.9
  %v919 = vmul.f32 %v887, 0.9
  %v920 = vmul.f32 %v888, 0.9
  %v921 = vmul.f32 %v889, 0.9
  %v922 = vmul.f32 %v890, 0.9
  %v923 = vmul.f32 %v891, 0.9
  %v924 = vmul.f32 %v892, 0.9
  %v925 = vadd.f32 %v909, %v191
  %v926 = vadd.f32 %v910, %v194
  %v927 = vadd.f32 %v911, %v199
  %v928 = vadd.f32 %v912, %v202
  %v929 = vadd.f32 %v913, %v207
  %v930 = vadd.f32 %v914, %v210
  %v931 = vadd.f32 %v915, %v215
  %v932 = vadd.f32 %v916, %v218
  %v933 = vadd.f32 %v917, %v223
  %v934 = vadd.f32 %v918, %v226
  %v935 = vadd.f32 %v919, %v231
  %v936 = vadd.f32 %v920, %v234
  %v937 = vadd.f32 %v921, %v239
  %v938 = vadd.f32 %v922, %v242
  %v939 = vadd.f32 %v923, %v247
  %v940 = vadd.f32 %v924, %v250
  %vm941 = vcmp.gt.f32.partialorder %v925, 1.0
  %vm942 = vcmp.gt.f32.partialorder %v926, 1.0
  %vm943 = vcmp.gt.f32.partialorder %v927, 1.0
  %vm944 = vcmp.gt.f32.partialorder %v928, 1.0
  %vm945 = vcmp.gt.f32.partialorder %v929, 1.0
  %vm946 = vcmp.gt.f32.partialorder %v930, 1.0
  %vm947 = vcmp.gt.f32.partialorder %v931, 1.0
  %vm948 = vcmp.gt.f32.partialorder %v932, 1.0
  %vm949 = vcmp.gt.f32.partialorder %v933, 1.0
  %vm950 = vcmp.gt.f32.partialorder %v934, 1.0
  %vm951 = vcmp.gt.f32.partialorder %v935, 1.0
  %vm952 = vcmp.gt.f32.partialorder %v936, 1.0
  %vm953 = vcmp.gt.f32.partialorder %v937, 1.0
  %vm954 = vcmp.gt.f32.partialorder %v938, 1.0
  %vm955 = vcmp.gt.f32.partialorder %v939, 1.0
  %vm956 = vcmp.gt.f32.partialorder %v940, 1.0
  %v957 = vsel %vm941, 1, 0
  %v958 = vsel %vm942, 1, 0
  %v959 = vsel %vm943, 1, 0
  %v960 = vsel %vm944, 1, 0
  %v961 = vsel %vm945, 1, 0
  %v962 = vsel %vm946, 1, 0
  %v963 = vsel %vm947, 1, 0
  %v964 = vsel %vm948, 1, 0
  %v965 = vsel %vm949, 1, 0
  %v966 = vsel %vm950, 1, 0
  %v967 = vsel %vm951, 1, 0
  %v968 = vsel %vm952, 1, 0
  %v969 = vsel %vm953, 1, 0
  %v970 = vsel %vm954, 1, 0
  %v971 = vsel %vm955, 1, 0
  %v972 = vsel %vm956, 1, 0
  %v973 = vcvt.s32.f32 %v957
  %v974 = vcvt.s32.f32 %v958
  %v975 = vcvt.s32.f32 %v959
  %v976 = vcvt.s32.f32 %v960
  %v977 = vcvt.s32.f32 %v961
  %v978 = vcvt.s32.f32 %v962
  %v979 = vcvt.s32.f32 %v963
  %v980 = vcvt.s32.f32 %v964
  %v981 = vcvt.s32.f32 %v965
  %v982 = vcvt.s32.f32 %v966
  %v983 = vcvt.s32.f32 %v967
  %v984 = vcvt.s32.f32 %v968
  %v985 = vcvt.s32.f32 %v969
  %v986 = vcvt.s32.f32 %v970
  %v987 = vcvt.s32.f32 %v971
  %v988 = vcvt.s32.f32 %v972
  %v989 = vsub.f32 %v925, %v973
  %v990 = vsub.f32 %v926, %v974
  %v991 = vsub.f32 %v927, %v975
  %v992 = vsub.f32 %v928, %v976
  %v993 = vsub.f32 %v929, %v977
  %v994 = vsub.f32 %v930, %v978
  %v995 = vsub.f32 %v931, %v979
  %v996 = vsub.f32 %v932, %v980
  %v997 = vsub.f32 %v933, %v981
  %v998 = vsub.f32 %v934, %v982
  %v999 = vsub.f32 %v935, %v983
  %v1000 = vsub.f32 %v936, %v984
  %v1001 = vsub.f32 %v937, %v985
  %v1002 = vsub.f32 %v938, %v986
  %v1003 = vsub.f32 %v939, %v987
  %v1004 = vsub.f32 %v940, %v988
  %v1005 = vadd.f32 %v893, %v973
  %v1006 = vadd.f32 %v894, %v974
  %v1007 = vadd.f32 %v895, %v975
  %v1008 = vadd.f32 %v896, %v976
  %v1009 = vadd.f32 %v897, %v977
  %v1010 = vadd.f32 %v898, %v978
  %v1011 = vadd.f32 %v899, %v979
  %v1012 = vadd.f32 %v900, %v980
  %v1013 = vadd.f32 %v901, %v981
  %v1014 = vadd.f32 %v902, %v982
  %v1015 = vadd.f32 %v903, %v983
  %v1016 = vadd.f32 %v904, %v984
  %v1017 = vadd.f32 %v905, %v985
  %v1018 = vadd.f32 %v906, %v986
  %v1019 = vadd.f32 %v907, %v987
  %v1020 = vadd.f32 %v908, %v988
  %v1021 = vmul.f32 %v989, 0.9
  %v1022 = vmul.f32 %v990, 0.9
  %v1023 = vmul.f32 %v991, 0.9
  %v1024 = vmul.f32 %v992, 0.9
  %v1025 = vmul.f32 %v993, 0.9
  %v1026 = vmul.f32 %v994, 0.9
  %v1027 = vmul.f32 %v995, 0.9
  %v1028 = vmul.f32 %v996, 0.9
  %v1029 = vmul.f32 %v997, 0.9
  %v1030 = vmul.f32 %v998, 0.9
  %v1031 = vmul.f32 %v999, 0.9
  %v1032 = vmul.f32 %v1000, 0.9
  %v1033 = vmul.f32 %v1001, 0.9
  %v1034 = vmul.f32 %v1002, 0.9
  %v1035 = vmul.f32 %v1003, 0.9
  %v1036 = vmul.f32 %v1004, 0.9
  %v1037 = vadd.f32 %v1021, %v191
  %v1038 = vadd.f32 %v1022, %v194
  %v1039 = vadd.f32 %v1023, %v199
  %v1040 = vadd.f32 %v1024, %v202
  %v1041 = vadd.f32 %v1025, %v207
  %v1042 = vadd.f32 %v1026, %v210
  %v1043 = vadd.f32 %v1027, %v215
  %v1044 = vadd.f32 %v1028, %v218
  %v1045 = vadd.f32 %v1029, %v223
  %v1046 = vadd.f32 %v1030, %v226
  %v1047 = vadd.f32 %v1031, %v231
  %v1048 = vadd.f32 %v1032, %v234
  %v1049 = vadd.f32 %v1033, %v239
  %v1050 = vadd.f32 %v1034, %v242
  %v1051 = vadd.f32 %v1035, %v247
  %v1052 = vadd.f32 %v1036, %v250
  %vm1053 = vcmp.gt.f32.partialorder %v1037, 1.0
  %vm1054 = vcmp.gt.f32.partialorder %v1038, 1.0
  %vm1055 = vcmp.gt.f32.partialorder %v1039, 1.0
  %vm1056 = vcmp.gt.f32.partialorder %v1040, 1.0
  %vm1057 = vcmp.gt.f32.partialorder %v1041, 1.0
  %vm1058 = vcmp.gt.f32.partialorder %v1042, 1.0
  %vm1059 = vcmp.gt.f32.partialorder %v1043, 1.0
  %vm1060 = vcmp.gt.f32.partialorder %v1044, 1.0
  %vm1061 = vcmp.gt.f32.partialorder %v1045, 1.0
  %vm1062 = vcmp.gt.f32.partialorder %v1046, 1.0
  %vm1063 = vcmp.gt.f32.partialorder %v1047, 1.0
  %vm1064 = vcmp.gt.f32.partialorder %v1048, 1.0
  %vm1065 = vcmp.gt.f32.partialorder %v1049, 1.0
  %vm1066 = vcmp.gt.f32.partialorder %v1050, 1.0
  %vm1067 = vcmp.gt.f32.partialorder %v1051, 1.0
  %vm1068 = vcmp.gt.f32.partialorder %v1052, 1.0
  %v1069 = vsel %vm1053, 1, 0
  %v1070 = vsel %vm1054, 1, 0
  %v1071 = vsel %vm1055, 1, 0
  %v1072 = vsel %vm1056, 1, 0
  %v1073 = vsel %vm1057, 1, 0
  %v1074 = vsel %vm1058, 1, 0
  %v1075 = vsel %vm1059, 1, 0
  %v1076 = vsel %vm1060, 1, 0
  %v1077 = vsel %vm1061, 1, 0
  %v1078 = vsel %vm1062, 1, 0
  %v1079 = vsel %vm1063, 1, 0
  %v1080 = vsel %vm1064, 1, 0
  %v1081 = vsel %vm1065, 1, 0
  %v1082 = vsel %vm1066, 1, 0
  %v1083 = vsel %vm1067, 1, 0
  %v1084 = vsel %vm1068, 1, 0
  %v1085 = vcvt.s32.f32 %v1069
  %v1086 = vcvt.s32.f32 %v1070
  %v1087 = vcvt.s32.f32 %v1071
  %v1088 = vcvt.s32.f32 %v1072
  %v1089 = vcvt.s32.f32 %v1073
  %v1090 = vcvt.s32.f32 %v1074
  %v1091 = vcvt.s32.f32 %v1075
  %v1092 = vcvt.s32.f32 %v1076
  %v1093 = vcvt.s32.f32 %v1077
  %v1094 = vcvt.s32.f32 %v1078
  %v1095 = vcvt.s32.f32 %v1079
  %v1096 = vcvt.s32.f32 %v1080
  %v1097 = vcvt.s32.f32 %v1081
  %v1098 = vcvt.s32.f32 %v1082
  %v1099 = vcvt.s32.f32 %v1083
  %v1100 = vcvt.s32.f32 %v1084
  %v1101 = vadd.f32 %v1005, %v1085
  %v1102 = vadd.f32 %v1006, %v1086
  %v1103 = vadd.f32 %v1007, %v1087
  %v1104 = vadd.f32 %v1008, %v1088
  %v1105 = vadd.f32 %v1009, %v1089
  %v1106 = vadd.f32 %v1010, %v1090
  %v1107 = vadd.f32 %v1011, %v1091
  %v1108 = vadd.f32 %v1012, %v1092
  %v1109 = vadd.f32 %v1013, %v1093
  %v1110 = vadd.f32 %v1014, %v1094
  %v1111 = vadd.f32 %v1015, %v1095
  %v1112 = vadd.f32 %v1016, %v1096
  %v1113 = vadd.f32 %v1017, %v1097
  %v1114 = vadd.f32 %v1018, %v1098
  %v1115 = vadd.f32 %v1019, %v1099
  %v1116 = vadd.f32 %v1020, %v1100
  %v1117 = vpack.c.bf16 %v1102, %v1101
  %v1118 = vpack.c.bf16 %v1104, %v1103
  %v1119 = vpack.c.bf16 %v1106, %v1105
  %v1120 = vpack.c.bf16 %v1108, %v1107
  %v1121 = vpack.c.bf16 %v1110, %v1109
  %v1122 = vpack.c.bf16 %v1112, %v1111
  %v1123 = vpack.c.bf16 %v1114, %v1113
  %v1124 = vpack.c.bf16 %v1116, %v1115
  %v1125 = vld [vmem:[%s3] sm:$0xf]
  %v1126 = vld [vmem:[%s3 + $0x4] sm:$0xf]
  %v1127 = vld [vmem:[%s3 + $0x8] sm:$0xf]
  %v1128 = vld [vmem:[%s3 + $0xc] sm:$0xf]
  %v1129 = vld [vmem:[%s3 + $0x10] sm:$0xf]
  %v1130 = vld [vmem:[%s3 + $0x14] sm:$0xf]
  %v1131 = vld [vmem:[%s3 + $0x18] sm:$0xf]
  %v1132 = vld [vmem:[%s3 + $0x1c] sm:$0xf]
  %v1133 = vld [vmem:[%s3 + $0x20] sm:$0xf]
  %v1134 = vld [vmem:[%s3 + $0x24] sm:$0xf]
  %v1135 = vld [vmem:[%s3 + $0x28] sm:$0xf]
  %v1136 = vld [vmem:[%s3 + $0x2c] sm:$0xf]
  %v1137 = vld [vmem:[%s3 + $0x30] sm:$0xf]
  %v1138 = vld [vmem:[%s3 + $0x34] sm:$0xf]
  %v1139 = vld [vmem:[%s3 + $0x38] sm:$0xf]
  %v1140 = vld [vmem:[%s3 + $0x3c] sm:$0xf]
  %v1141 = vld [vmem:[%s4] sm:$0x1]
  %v1143 = vlaneseq
  %v1144 = vshrl.u32 %v1143, 7
  %v1145 = vsub.s32 0, %v1144
  %v1146 = vrot.slane %v1141, %v1145
  %v1164 = vunpack.c.l.b16 %v1125
  %v1165 = vunpack.c.l.b16 %v1126
  %v1166 = vunpack.c.l.b16 %v1127
  %v1167 = vunpack.c.l.b16 %v1128
  %v1168 = vunpack.c.l.b16 %v1129
  %v1169 = vunpack.c.l.b16 %v1130
  %v1170 = vunpack.c.l.b16 %v1131
  %v1171 = vunpack.c.l.b16 %v1132
  %v1172 = vunpack.c.l.b16 %v1133
  %v1173 = vunpack.c.l.b16 %v1134
  %v1174 = vunpack.c.l.b16 %v1135
  %v1175 = vunpack.c.l.b16 %v1136
  %v1176 = vunpack.c.l.b16 %v1137
  %v1177 = vunpack.c.l.b16 %v1138
  %v1178 = vunpack.c.l.b16 %v1139
  %v1179 = vunpack.c.l.b16 %v1140
  %v1180 = vpack.c.b16 %v1165, %v1164
  %v1181 = vpack.c.b16 %v1167, %v1166
  %v1182 = vpack.c.b16 %v1169, %v1168
  %v1183 = vpack.c.b16 %v1171, %v1170
  %v1184 = vpack.c.b16 %v1173, %v1172
  %v1185 = vpack.c.b16 %v1175, %v1174
  %v1186 = vpack.c.b16 %v1177, %v1176
  %v1187 = vpack.c.b16 %v1179, %v1178
  %1196 = vmatprep.subr.bf16.mxu0 0
  %1197 = vmatpush1.bf16.msra.mxu0 %v1187
  %1198 = vmatprep.subr.bf16.mxu0 0
  %1199 = vmatpush1.bf16.msra.mxu0 %v1186
  %1200 = vmatprep.subr.bf16.mxu0 0
  %1201 = vmatpush1.bf16.msra.mxu0 %v1185
  %1202 = vmatprep.subr.bf16.mxu0 0
  %1203 = vmatpush1.bf16.msra.mxu0 %v1184
  %1204 = vmatprep.subr.bf16.mxu0 0
  %1205 = vmatpush1.bf16.msra.mxu0 %v1183
  %1206 = vmatprep.subr.bf16.mxu0 0
  %1207 = vmatpush1.bf16.msra.mxu0 %v1182
  %1208 = vmatprep.subr.bf16.mxu0 0
  %1209 = vmatpush1.bf16.msra.mxu0 %v1181
  %1210 = vmatprep.subr.bf16.mxu0 0
  %1211 = vmatpush1.bf16.msra.mxu0 %v1180
  %1212 = vmatprep.subr.bf16.mxu0 0
  %1213 = vmatpush2.bf16.msra.mxu0 0
  %1214 = vmatprep.subr.bf16.mxu0 0
  %1215 = vmatpush2.bf16.msra.mxu0 0
  %1216 = vmatprep.subr.bf16.mxu0 0
  %1217 = vmatpush2.bf16.msra.mxu0 0
  %1218 = vmatprep.subr.bf16.mxu0 0
  %1219 = vmatpush2.bf16.msra.mxu0 0
  %1220 = vmatprep.subr.bf16.mxu0 0
  %1221 = vmatpush2.bf16.msra.mxu0 0
  %1222 = vmatprep.subr.bf16.mxu0 0
  %1223 = vmatpush2.bf16.msra.mxu0 0
  %1224 = vmatprep.subr.bf16.mxu0 0
  %1225 = vmatpush2.bf16.msra.mxu0 0
  %1226 = vmatprep.subr.bf16.mxu0 0
  %1227 = vmatpush2.bf16.msra.mxu0 0
  %1228 = vmatprep.mubr.bf16.mxu0 0
  %1229 = vmatmul.mubr.bf16.gmra.mxu0 %v1117
  %v1230 = vpop.f32.mrf.mxu0
  %v1231 = vadd.f32 %v1146, %v1230
  %v1232 = vpop.f32.mrf.mxu0
  %v1233 = vpop.f32.mrf.mxu0
  %v1234 = vadd.f32 %v1146, %v1233
  %v1235 = vpop.f32.mrf.mxu0
  %1236 = vmatprep.mubr.bf16.mxu0 0
  %1237 = vmatmul.mubr.bf16.gmra.mxu0 %v1118
  %v1238 = vpop.f32.mrf.mxu0
  %v1239 = vadd.f32 %v1146, %v1238
  %v1240 = vpop.f32.mrf.mxu0
  %v1241 = vpop.f32.mrf.mxu0
  %v1242 = vadd.f32 %v1146, %v1241
  %v1243 = vpop.f32.mrf.mxu0
  %1244 = vmatprep.mubr.bf16.mxu0 0
  %1245 = vmatmul.mubr.bf16.gmra.mxu0 %v1119
  %v1246 = vpop.f32.mrf.mxu0
  %v1247 = vadd.f32 %v1146, %v1246
  %v1248 = vpop.f32.mrf.mxu0
  %v1249 = vpop.f32.mrf.mxu0
  %v1250 = vadd.f32 %v1146, %v1249
  %v1251 = vpop.f32.mrf.mxu0
  %1252 = vmatprep.mubr.bf16.mxu0 0
  %1253 = vmatmul.mubr.bf16.gmra.mxu0 %v1120
  %v1254 = vpop.f32.mrf.mxu0
  %v1255 = vadd.f32 %v1146, %v1254
  %v1256 = vpop.f32.mrf.mxu0
  %v1257 = vpop.f32.mrf.mxu0
  %v1258 = vadd.f32 %v1146, %v1257
  %v1259 = vpop.f32.mrf.mxu0
  %1260 = vmatprep.mubr.bf16.mxu0 0
  %1261 = vmatmul.mubr.bf16.gmra.mxu0 %v1121
  %v1262 = vpop.f32.mrf.mxu0
  %v1263 = vadd.f32 %v1146, %v1262
  %v1264 = vpop.f32.mrf.mxu0
  %v1265 = vpop.f32.mrf.mxu0
  %v1266 = vadd.f32 %v1146, %v1265
  %v1267 = vpop.f32.mrf.mxu0
  %1268 = vmatprep.mubr.bf16.mxu0 0
  %1269 = vmatmul.mubr.bf16.gmra.mxu0 %v1122
  %v1270 = vpop.f32.mrf.mxu0
  %v1271 = vadd.f32 %v1146, %v1270
  %v1272 = vpop.f32.mrf.mxu0
  %v1273 = vpop.f32.mrf.mxu0
  %v1274 = vadd.f32 %v1146, %v1273
  %v1275 = vpop.f32.mrf.mxu0
  %1276 = vmatprep.mubr.bf16.mxu0 0
  %1277 = vmatmul.mubr.bf16.gmra.mxu0 %v1123
  %v1278 = vpop.f32.mrf.mxu0
  %v1279 = vadd.f32 %v1146, %v1278
  %v1280 = vpop.f32.mrf.mxu0
  %v1281 = vpop.f32.mrf.mxu0
  %v1282 = vadd.f32 %v1146, %v1281
  %v1283 = vpop.f32.mrf.mxu0
  %1284 = vmatprep.mubr.bf16.mxu0 0
  %1285 = vmatmul.mubr.bf16.gmra.mxu0 %v1124
  %v1286 = vpop.f32.mrf.mxu0
  %v1287 = vadd.f32 %v1146, %v1286
  %v1288 = vpop.f32.mrf.mxu0
  %v1289 = vpop.f32.mrf.mxu0
  %v1290 = vadd.f32 %v1146, %v1289
  %v1291 = vpop.f32.mrf.mxu0
  %1292 = vdwg.mxu0
  %1293 = vmax.xlane.f32.xlu0 %v1231
  %v1294 = vpop.xlane.xlu0 %1293
  %1295 = vmax.xlane.f32.xlu0 %v1234
  %v1296 = vpop.xlane.xlu0 %1295
  %1297 = vmax.xlane.f32.xlu0 %v1239
  %v1298 = vpop.xlane.xlu0 %1297
  %1299 = vmax.xlane.f32.xlu0 %v1242
  %v1300 = vpop.xlane.xlu0 %1299
  %1301 = vmax.xlane.f32.xlu0 %v1247
  %v1302 = vpop.xlane.xlu0 %1301
  %1303 = vmax.xlane.f32.xlu0 %v1250
  %v1304 = vpop.xlane.xlu0 %1303
  %1305 = vmax.xlane.f32.xlu0 %v1255
  %v1306 = vpop.xlane.xlu0 %1305
  %1307 = vmax.xlane.f32.xlu0 %v1258
  %v1308 = vpop.xlane.xlu0 %1307
  %1309 = vmax.xlane.f32.xlu0 %v1263
  %v1310 = vpop.xlane.xlu0 %1309
  %1311 = vmax.xlane.f32.xlu0 %v1266
  %v1312 = vpop.xlane.xlu0 %1311
  %1313 = vmax.xlane.f32.xlu0 %v1271
  %v1314 = vpop.xlane.xlu0 %1313
  %1315 = vmax.xlane.f32.xlu0 %v1274
  %v1316 = vpop.xlane.xlu0 %1315
  %1317 = vmax.xlane.f32.xlu0 %v1279
  %v1318 = vpop.xlane.xlu0 %1317
  %1319 = vmax.xlane.f32.xlu0 %v1282
  %v1320 = vpop.xlane.xlu0 %1319
  %1321 = vmax.xlane.f32.xlu0 %v1287
  %v1322 = vpop.xlane.xlu0 %1321
  %1323 = vmax.xlane.f32.xlu0 %v1290
  %v1324 = vpop.xlane.xlu0 %1323
  %v1325 = vsub.f32 %v1231, %v1294
  %v1326 = vsub.f32 %v1234, %v1296
  %v1327 = vsub.f32 %v1239, %v1298
  %v1328 = vsub.f32 %v1242, %v1300
  %v1329 = vsub.f32 %v1247, %v1302
  %v1330 = vsub.f32 %v1250, %v1304
  %v1331 = vsub.f32 %v1255, %v1306
  %v1332 = vsub.f32 %v1258, %v1308
  %v1333 = vsub.f32 %v1263, %v1310
  %v1334 = vsub.f32 %v1266, %v1312
  %v1335 = vsub.f32 %v1271, %v1314
  %v1336 = vsub.f32 %v1274, %v1316
  %v1337 = vsub.f32 %v1279, %v1318
  %v1338 = vsub.f32 %v1282, %v1320
  %v1339 = vsub.f32 %v1287, %v1322
  %v1340 = vsub.f32 %v1290, %v1324
  %v1341 = vmul.f32 %v1325, 1.442695
  %v1342 = vpow.pop %v1341
  %v1343 = vmul.f32 %v1326, 1.442695
  %v1344 = vpow.pop %v1343
  %v1345 = vmul.f32 %v1327, 1.442695
  %v1346 = vpow.pop %v1345
  %v1347 = vmul.f32 %v1328, 1.442695
  %v1348 = vpow.pop %v1347
  %v1349 = vmul.f32 %v1329, 1.442695
  %v1350 = vpow.pop %v1349
  %v1351 = vmul.f32 %v1330, 1.442695
  %v1352 = vpow.pop %v1351
  %v1353 = vmul.f32 %v1331, 1.442695
  %v1354 = vpow.pop %v1353
  %v1355 = vmul.f32 %v1332, 1.442695
  %v1356 = vpow.pop %v1355
  %v1357 = vmul.f32 %v1333, 1.442695
  %v1358 = vpow.pop %v1357
  %v1359 = vmul.f32 %v1334, 1.442695
  %v1360 = vpow.pop %v1359
  %v1361 = vmul.f32 %v1335, 1.442695
  %v1362 = vpow.pop %v1361
  %v1363 = vmul.f32 %v1336, 1.442695
  %v1364 = vpow.pop %v1363
  %v1365 = vmul.f32 %v1337, 1.442695
  %v1366 = vpow.pop %v1365
  %v1367 = vmul.f32 %v1338, 1.442695
  %v1368 = vpow.pop %v1367
  %v1369 = vmul.f32 %v1339, 1.442695
  %v1370 = vpow.pop %v1369
  %v1371 = vmul.f32 %v1340, 1.442695
  %v1372 = vpow.pop %v1371
  %1373 = vadd.xlane.f32.xlu0 %v1342
  %v1374 = vpop.xlane.xlu0 %1373
  %1375 = vadd.xlane.f32.xlu0 %v1344
  %v1376 = vpop.xlane.xlu0 %1375
  %1377 = vadd.xlane.f32.xlu0 %v1346
  %v1378 = vpop.xlane.xlu0 %1377
  %1379 = vadd.xlane.f32.xlu0 %v1348
  %v1380 = vpop.xlane.xlu0 %1379
  %1381 = vadd.xlane.f32.xlu0 %v1350
  %v1382 = vpop.xlane.xlu0 %1381
  %1383 = vadd.xlane.f32.xlu0 %v1352
  %v1384 = vpop.xlane.xlu0 %1383
  %1385 = vadd.xlane.f32.xlu0 %v1354
  %v1386 = vpop.xlane.xlu0 %1385
  %1387 = vadd.xlane.f32.xlu0 %v1356
  %v1388 = vpop.xlane.xlu0 %1387
  %1389 = vadd.xlane.f32.xlu0 %v1358
  %v1390 = vpop.xlane.xlu0 %1389
  %1391 = vadd.xlane.f32.xlu0 %v1360
  %v1392 = vpop.xlane.xlu0 %1391
  %1393 = vadd.xlane.f32.xlu0 %v1362
  %v1394 = vpop.xlane.xlu0 %1393
  %1395 = vadd.xlane.f32.xlu0 %v1364
  %v1396 = vpop.xlane.xlu0 %1395
  %1397 = vadd.xlane.f32.xlu0 %v1366
  %v1398 = vpop.xlane.xlu0 %1397
  %1399 = vadd.xlane.f32.xlu0 %v1368
  %v1400 = vpop.xlane.xlu0 %1399
  %1401 = vadd.xlane.f32.xlu0 %v1370
  %v1402 = vpop.xlane.xlu0 %1401
  %1403 = vadd.xlane.f32.xlu0 %v1372
  %v1404 = vpop.xlane.xlu0 %1403
  %v1405 = vlog2.pop %v1374
  %v1406 = vmul.f32 %v1405, 0.6931472
  %v1407 = vlog2.pop %v1376
  %v1408 = vmul.f32 %v1407, 0.6931472
  %v1409 = vlog2.pop %v1378
  %v1410 = vmul.f32 %v1409, 0.6931472
  %v1411 = vlog2.pop %v1380
  %v1412 = vmul.f32 %v1411, 0.6931472
  %v1413 = vlog2.pop %v1382
  %v1414 = vmul.f32 %v1413, 0.6931472
  %v1415 = vlog2.pop %v1384
  %v1416 = vmul.f32 %v1415, 0.6931472
  %v1417 = vlog2.pop %v1386
  %v1418 = vmul.f32 %v1417, 0.6931472
  %v1419 = vlog2.pop %v1388
  %v1420 = vmul.f32 %v1419, 0.6931472
  %v1421 = vlog2.pop %v1390
  %v1422 = vmul.f32 %v1421, 0.6931472
  %v1423 = vlog2.pop %v1392
  %v1424 = vmul.f32 %v1423, 0.6931472
  %v1425 = vlog2.pop %v1394
  %v1426 = vmul.f32 %v1425, 0.6931472
  %v1427 = vlog2.pop %v1396
  %v1428 = vmul.f32 %v1427, 0.6931472
  %v1429 = vlog2.pop %v1398
  %v1430 = vmul.f32 %v1429, 0.6931472
  %v1431 = vlog2.pop %v1400
  %v1432 = vmul.f32 %v1431, 0.6931472
  %v1433 = vlog2.pop %v1402
  %v1434 = vmul.f32 %v1433, 0.6931472
  %v1435 = vlog2.pop %v1404
  %v1436 = vmul.f32 %v1435, 0.6931472
  %v1437 = vsub.f32 %v1325, %v1406
  %v1438 = vsub.f32 %v1326, %v1408
  %v1439 = vsub.f32 %v1327, %v1410
  %v1440 = vsub.f32 %v1328, %v1412
  %v1441 = vsub.f32 %v1329, %v1414
  %v1442 = vsub.f32 %v1330, %v1416
  %v1443 = vsub.f32 %v1331, %v1418
  %v1444 = vsub.f32 %v1332, %v1420
  %v1445 = vsub.f32 %v1333, %v1422
  %v1446 = vsub.f32 %v1334, %v1424
  %v1447 = vsub.f32 %v1335, %v1426
  %v1448 = vsub.f32 %v1336, %v1428
  %v1449 = vsub.f32 %v1337, %v1430
  %v1450 = vsub.f32 %v1338, %v1432
  %v1451 = vsub.f32 %v1339, %v1434
  %v1452 = vsub.f32 %v1340, %v1436
  %1453 = vst [vmem:[%s5] sm:$0xff] %v1437
  %1454 = vst [vmem:[%s5 + $0x8] sm:$0xff] %v1438
  %1455 = vst [vmem:[%s5 + $0x10] sm:$0xff] %v1439
  %1456 = vst [vmem:[%s5 + $0x18] sm:$0xff] %v1440
  %1457 = vst [vmem:[%s5 + $0x20] sm:$0xff] %v1441
  %1458 = vst [vmem:[%s5 + $0x28] sm:$0xff] %v1442
  %1459 = vst [vmem:[%s5 + $0x30] sm:$0xff] %v1443
  %1460 = vst [vmem:[%s5 + $0x38] sm:$0xff] %v1444
  %1461 = vst [vmem:[%s5 + $0x40] sm:$0xff] %v1445
  %1462 = vst [vmem:[%s5 + $0x48] sm:$0xff] %v1446
  %1463 = vst [vmem:[%s5 + $0x50] sm:$0xff] %v1447
  %1464 = vst [vmem:[%s5 + $0x58] sm:$0xff] %v1448
  %1465 = vst [vmem:[%s5 + $0x60] sm:$0xff] %v1449
  %1466 = vst [vmem:[%s5 + $0x68] sm:$0xff] %v1450
  %1467 = vst [vmem:[%s5 + $0x70] sm:$0xff] %v1451
  %1468 = vst [vmem:[%s5 + $0x78] sm:$0xff] %v1452
  // Predicated region
  $region22: #{gfet_forward.1} parent=0 // pred_check
    _
  $region23: #{gfet_forward.1} parent=0 // pred_check_branch
    %1470 = sbr.rel (0) target = $region25
  $region24: #{gfet_forward.1} parent=0 // pred_region
    _
  $region25: #{gfet_forward.1} parent=0 // pred_fallthru
    _
  // Predicated region
  $region26: #{gfet_forward.1} parent=0 // pred_check
    _
  $region27: #{gfet_forward.1} parent=0 // pred_check_branch
    %1472 = sbr.rel (0) target = $region29
  $region28: #{gfet_forward.1} parent=0 // pred_region
    _
  $region29: #{gfet_forward.1} parent=0 // pred_fallthru
    _

</llo_original>
